<compile_context>
chip_gen: v5e
topology: v5e:2x2
jax: 0.10.0
libtpu: 0.0.40
codegen_flags: <defaults>
</compile_context>

<pallas_src>
import jax
import jax.numpy as jnp
from jax.experimental import pallas as pl
from jax.experimental.pallas import tpu as pltpu


# Model dimensions (small, consistent with the module's head).
BATCH = 256          # batch of texts (big enough to exercise the batch grid)
HDIM = 256           # "transformer_dim" (FinBERT hidden size, shrunk for test)
SDIM = 16            # sentiment_dim
PROJ = 256           # hidden width of projection MLP (fixed at 256 in module)
VDIM = 128           # vector_dim
LN_EPS = 1e-5        # nn.LayerNorm default
L2_EPS = 1e-12       # F.normalize default

TILE_B = 128         # batch tile (128 is the v5e-safe choice; 256 also fine on v6e/v7x)


def _head_kernel(cls_ref, w1_ref, w2_ref, slab_ref, out_ref):
    # slab rows: 0 = b1' (fused bias), 1 = LN gamma, 2 = LN beta, 3 = b2 (padded)
    cls = cls_ref[...]                                                # (Tb, H) bf16

    # Fused first projection: (Tb, H) @ (H, 256) -> f32 accumulation.
    h = jnp.dot(cls, w1_ref[...], preferred_element_type=jnp.float32)
    h = h + slab_ref[0:1, :]                                          # (Tb, 256) f32

    # LayerNorm(256), one-pass statistics (single pair of lane reductions).
    inv_n = 1.0 / PROJ
    s = jnp.sum(h, axis=-1, keepdims=True)
    ss = jnp.sum(h * h, axis=-1, keepdims=True)
    mean = s * inv_n
    var = jnp.maximum(ss * inv_n - mean * mean, 0.0)
    hn = (h - mean) * jax.lax.rsqrt(var + LN_EPS)
    hn = hn * slab_ref[1:2, :] + slab_ref[2:3, :]

    # ReLU
    hn = jnp.maximum(hn, 0.0)

    # Final projection: (Tb, 256) @ (256, V), bf16 operands, f32 accumulation.
    v = jnp.dot(hn.astype(jnp.bfloat16), w2_ref[...],
                preferred_element_type=jnp.float32)
    v = v + slab_ref[3:4, :VDIM]                                      # (Tb, V)

    # L2 normalize over feature dim (F.normalize, p=2, dim=1), divide-free.
    sumsq = jnp.sum(v * v, axis=-1, keepdims=True)
    inv = jax.lax.rsqrt(jnp.maximum(sumsq, L2_EPS * L2_EPS))
    out_ref[...] = v * inv


def financial_text_vectorizer_head(cls_emb, params, *, tile_b=TILE_B):
    """cls_emb: (B, H) float32. params: dict of head weights. Returns (B, VDIM) f32."""
    B, H = cls_emb.shape
    assert H == HDIM

    ws, bs, w1, b1 = params["ws"], params["bs"], params["w1"], params["b1"]
    gamma, beta, w2, b2 = params["gamma"], params["beta"], params["w2"], params["b2"]

    # Fold the sentiment linear into the first projection (exact up to fp
    # reassociation):  concat([cls, sent]) @ W1 == cls @ W1' + b1''
    w1_cls, w1_sent = w1[:HDIM], w1[HDIM:]
    w1_fused = w1_cls + ws @ w1_sent                   # (H, 256)
    b1_fused = b1 + bs @ w1_sent                       # (256,)

    # Per-feature vectors packed into one (4, 256) f32 slab.
    slab = jnp.stack(
        [b1_fused, gamma, beta, jnp.pad(b2, (0, PROJ - VDIM))], axis=0
    ).astype(jnp.float32)

    # bf16 matmul operands; accumulation stays f32 inside the kernel.
    x = cls_emb.astype(jnp.bfloat16)
    w1_b = w1_fused.astype(jnp.bfloat16)
    w2_b = w2.astype(jnp.bfloat16)

    # Pad batch to a multiple of the batch tile.
    b_pad = pl.cdiv(B, tile_b) * tile_b
    if b_pad != B:
        x = jnp.pad(x, ((0, b_pad - B), (0, 0)))

    out = pl.pallas_call(
        _head_kernel,
        out_shape=jax.ShapeDtypeStruct((b_pad, VDIM), jnp.float32),
        grid=(b_pad // tile_b,),
        in_specs=[
            pl.BlockSpec((tile_b, HDIM), lambda i: (i, 0)),   # cls tile (pipelined)
            pl.BlockSpec((HDIM, PROJ), lambda i: (0, 0)),     # fused W1 (resident)
            pl.BlockSpec((PROJ, VDIM), lambda i: (0, 0)),     # W2 (resident)
            pl.BlockSpec((4, PROJ), lambda i: (0, 0)),        # bias/LN slab (resident)
        ],
        out_specs=pl.BlockSpec((tile_b, VDIM), lambda i: (i, 0)),
        compiler_params=pltpu.CompilerParams(
            dimension_semantics=("parallel",),
        ),
    )(x, w1_b, w2_b, slab)

    return out[:B]


def _init_params(key):
    """Deterministic init mimicking nn.Linear's U(-1/sqrt(fan_in), +1/sqrt(fan_in))."""
    ks = jax.random.split(key, 8)

    def lin(kw, kb, fan_in, fan_out):
        bound = 1.0 / jnp.sqrt(fan_in)
        w = jax.random.uniform(kw, (fan_in, fan_out), jnp.float32, -bound, bound)
        b = jax.random.uniform(kb, (fan_out,), jnp.float32, -bound, bound)
        return w, b

    ws, bs = lin(ks[0], ks[1], HDIM, SDIM)
    w1, b1 = lin(ks[2], ks[3], HDIM + SDIM, PROJ)
    w2, b2 = lin(ks[4], ks[5], PROJ, VDIM)
    gamma = jnp.ones((PROJ,), jnp.float32)
    beta = jnp.zeros((PROJ,), jnp.float32)
    return dict(ws=ws, bs=bs, w1=w1, b1=b1, gamma=gamma, beta=beta, w2=w2, b2=b2)


def _reference(cls_emb, p):
    """Full-precision reference of the original (unfolded) module math."""
    sent = cls_emb @ p["ws"] + p["bs"]
    comb = jnp.concatenate([cls_emb, sent], axis=1)
    h = comb @ p["w1"] + p["b1"]
    mean = jnp.mean(h, axis=-1, keepdims=True)
    var = jnp.mean((h - mean) ** 2, axis=-1, keepdims=True)
    h = (h - mean) / jnp.sqrt(var + LN_EPS)
    h = h * p["gamma"] + p["beta"]
    h = jnp.maximum(h, 0.0)
    v = h @ p["w2"] + p["b2"]
    n = jnp.maximum(jnp.linalg.norm(v, axis=1, keepdims=True), L2_EPS)
    return v / n


if __name__ == "__main__":
    key = jax.random.PRNGKey(0)
    k_x, k_p = jax.random.split(key)

    # Synthetic CLS embeddings standing in for the transformer output.
    cls_emb = jax.random.normal(k_x, (BATCH, HDIM), jnp.float32)
    params = _init_params(k_p)

    out = financial_text_vectorizer_head(cls_emb, params)
    out = jax.block_until_ready(out)

    ref = _reference(cls_emb, params)
    assert out.shape == (BATCH, VDIM)
    # bf16 matmul operands -> relaxed tolerance vs the f32 reference.
    assert jnp.allclose(out, ref, atol=2e-2, rtol=2e-2), "mismatch vs JAX reference"
    # Normalization itself runs in f32 inside the kernel -> rows are unit-norm.
    assert jnp.allclose(jnp.linalg.norm(out, axis=1), 1.0, atol=1e-4)

    print("KERNEL_OK")
</pallas_src>

<mosaic_0001>
module attributes {stable_mosaic.version = 11 : i64} {
  func.func @_head_kernel(%arg0: i32, %arg1: memref<128x256xbf16, #tpu.memory_space<vmem>>, %arg2: memref<256x256xbf16, #tpu.memory_space<vmem>>, %arg3: memref<256x128xbf16, #tpu.memory_space<vmem>>, %arg4: memref<4x256xf32, #tpu.memory_space<vmem>>, %arg5: memref<128x128xf32, #tpu.memory_space<vmem>>) attributes {dimension_semantics = [#tpu.dimension_semantics<parallel>], iteration_bounds = array<i64: 2>, scalar_prefetch = 0 : i64, scratch_operands = 0 : i64, tpu.core_type = #tpu.core_type<tc>, window_params = [{transform_indices = @transform_0, window_bounds = array<i64: 128, 256>}, {pipeline_mode = #tpu.pipeline_mode<synchronous>, transform_indices = @transform_1, window_bounds = array<i64: 256, 256>}, {pipeline_mode = #tpu.pipeline_mode<synchronous>, transform_indices = @transform_2, window_bounds = array<i64: 256, 128>}, {pipeline_mode = #tpu.pipeline_mode<synchronous>, transform_indices = @transform_3, window_bounds = array<i64: 4, 256>}, {transform_indices = @transform_4, window_bounds = array<i64: 128, 128>}]} {
    %c0 = arith.constant 0 : index
    %c0_0 = arith.constant 0 : index
    %0 = vector.load %arg1[%c0, %c0_0] : memref<128x256xbf16, #tpu.memory_space<vmem>>, vector<128x256xbf16>
    %c0_1 = arith.constant 0 : index
    %c0_2 = arith.constant 0 : index
    %1 = vector.load %arg2[%c0_1, %c0_2] : memref<256x256xbf16, #tpu.memory_space<vmem>>, vector<256x256xbf16>
    %cst = arith.constant dense<0.000000e+00> : vector<128x256xf32>
    %2 = tpu.matmul %0, %1, %cst {dimension_numbers = #tpu.dot_dimension_numbers<[1], [0], [0], [1], [0, 0, 1, 1], [], []>} : vector<128x256xbf16>, vector<256x256xbf16>, vector<128x256xf32> -> vector<128x256xf32>
    %c0_3 = arith.constant 0 : index
    %c0_4 = arith.constant 0 : index
    %3 = vector.load %arg4[%c0_3, %c0_4] : memref<4x256xf32, #tpu.memory_space<vmem>>, vector<1x256xf32>
    %4 = vector.broadcast %3 : vector<1x256xf32> to vector<128x256xf32>
    %5 = arith.addf %2, %4 : vector<128x256xf32>
    %cst_5 = arith.constant dense<0.000000e+00> : vector<128xf32>
    %6 = vector.multi_reduction <add>, %5, %cst_5 [1] : vector<128x256xf32> to vector<128xf32>
    %7 = vector.shape_cast %6 : vector<128xf32> to vector<128x1xf32>
    %8 = arith.mulf %5, %5 : vector<128x256xf32>
    %cst_6 = arith.constant dense<0.000000e+00> : vector<128xf32>
    %9 = vector.multi_reduction <add>, %8, %cst_6 [1] : vector<128x256xf32> to vector<128xf32>
    %10 = vector.shape_cast %9 : vector<128xf32> to vector<128x1xf32>
    %cst_7 = arith.constant 3.906250e-03 : f32
    %11 = vector.broadcast %cst_7 : f32 to vector<128x1xf32>
    %12 = arith.mulf %7, %11 : vector<128x1xf32>
    %cst_8 = arith.constant 3.906250e-03 : f32
    %13 = vector.broadcast %cst_8 : f32 to vector<128x1xf32>
    %14 = arith.mulf %10, %13 : vector<128x1xf32>
    %15 = arith.mulf %12, %12 : vector<128x1xf32>
    %16 = arith.subf %14, %15 : vector<128x1xf32>
    %cst_9 = arith.constant 0.000000e+00 : f32
    %17 = vector.broadcast %cst_9 : f32 to vector<128x1xf32>
    %18 = arith.maximumf %16, %17 : vector<128x1xf32>
    %19 = vector.broadcast %12 : vector<128x1xf32> to vector<128x256xf32>
    %20 = arith.subf %5, %19 : vector<128x256xf32>
    %cst_10 = arith.constant 9.99999974E-6 : f32
    %21 = vector.broadcast %cst_10 : f32 to vector<128x1xf32>
    %22 = arith.addf %18, %21 : vector<128x1xf32>
    %23 = math.rsqrt %22 : vector<128x1xf32>
    %24 = vector.broadcast %23 : vector<128x1xf32> to vector<128x256xf32>
    %25 = arith.mulf %20, %24 : vector<128x256xf32>
    %c1 = arith.constant 1 : index
    %c0_11 = arith.constant 0 : index
    %26 = vector.load %arg4[%c1, %c0_11] : memref<4x256xf32, #tpu.memory_space<vmem>>, vector<1x256xf32>
    %27 = vector.broadcast %26 : vector<1x256xf32> to vector<128x256xf32>
    %28 = arith.mulf %25, %27 : vector<128x256xf32>
    %c2 = arith.constant 2 : index
    %c0_12 = arith.constant 0 : index
    %29 = vector.load %arg4[%c2, %c0_12] : memref<4x256xf32, #tpu.memory_space<vmem>>, vector<1x256xf32>
    %30 = vector.broadcast %29 : vector<1x256xf32> to vector<128x256xf32>
    %31 = arith.addf %28, %30 : vector<128x256xf32>
    %cst_13 = arith.constant 0.000000e+00 : f32
    %32 = vector.broadcast %cst_13 : f32 to vector<128x256xf32>
    %33 = arith.maximumf %31, %32 : vector<128x256xf32>
    %34 = arith.truncf %33 : vector<128x256xf32> to vector<128x256xbf16>
    %c0_14 = arith.constant 0 : index
    %c0_15 = arith.constant 0 : index
    %35 = vector.load %arg3[%c0_14, %c0_15] : memref<256x128xbf16, #tpu.memory_space<vmem>>, vector<256x128xbf16>
    %cst_16 = arith.constant dense<0.000000e+00> : vector<128x128xf32>
    %36 = tpu.matmul %34, %35, %cst_16 {dimension_numbers = #tpu.dot_dimension_numbers<[1], [0], [0], [1], [0, 0, 1, 1], [], []>} : vector<128x256xbf16>, vector<256x128xbf16>, vector<128x128xf32> -> vector<128x128xf32>
    %c3 = arith.constant 3 : index
    %c0_17 = arith.constant 0 : index
    %37 = vector.load %arg4[%c3, %c0_17] : memref<4x256xf32, #tpu.memory_space<vmem>>, vector<1x128xf32>
    %38 = vector.broadcast %37 : vector<1x128xf32> to vector<128x128xf32>
    %39 = arith.addf %36, %38 : vector<128x128xf32>
    %40 = arith.mulf %39, %39 : vector<128x128xf32>
    %cst_18 = arith.constant dense<0.000000e+00> : vector<128xf32>
    %41 = vector.multi_reduction <add>, %40, %cst_18 [1] : vector<128x128xf32> to vector<128xf32>
    %42 = vector.shape_cast %41 : vector<128xf32> to vector<128x1xf32>
    %cst_19 = arith.constant 1.000000e-24 : f32
    %43 = vector.broadcast %cst_19 : f32 to vector<128x1xf32>
    %44 = arith.maximumf %42, %43 : vector<128x1xf32>
    %45 = math.rsqrt %44 : vector<128x1xf32>
    %46 = vector.broadcast %45 : vector<128x1xf32> to vector<128x128xf32>
    %47 = arith.mulf %39, %46 : vector<128x128xf32>
    %c0_20 = arith.constant 0 : index
    %c0_21 = arith.constant 0 : index
    %48 = vector.load %arg5[%c0_20, %c0_21] : memref<128x128xf32, #tpu.memory_space<vmem>>, vector<128x128xf32>
    tpu.vector_store %arg5[%c0_20, %c0_21], %47 {strides = array<i32>} : memref<128x128xf32, #tpu.memory_space<vmem>>, vector<128x128xf32>,
    return
  }
  func.func @transform_0(%arg0: i32) -> (i32, i32) {
    %c0_i32 = arith.constant 0 : i32
    %c0_i32_0 = arith.constant 0 : i32
    return %arg0, %c0_i32 : i32, i32
  }
  func.func @transform_1(%arg0: i32) -> (i32, i32) {
    %c0_i32 = arith.constant 0 : i32
    %c0_i32_0 = arith.constant 0 : i32
    %c0_i32_1 = arith.constant 0 : i32
    return %c0_i32, %c0_i32_0 : i32, i32
  }
  func.func @transform_2(%arg0: i32) -> (i32, i32) {
    %c0_i32 = arith.constant 0 : i32
    %c0_i32_0 = arith.constant 0 : i32
    %c0_i32_1 = arith.constant 0 : i32
    return %c0_i32, %c0_i32_0 : i32, i32
  }
  func.func @transform_3(%arg0: i32) -> (i32, i32) {
    %c0_i32 = arith.constant 0 : i32
    %c0_i32_0 = arith.constant 0 : i32
    %c0_i32_1 = arith.constant 0 : i32
    return %c0_i32, %c0_i32_0 : i32, i32
  }
  func.func @transform_4(%arg0: i32) -> (i32, i32) {
    %c0_i32 = arith.constant 0 : i32
    %c0_i32_0 = arith.constant 0 : i32
    return %arg0, %c0_i32 : i32, i32
  }
}

</mosaic_0001>

<llo_original>
// kernel: tpu_custom_call.1
$region0: #{tpu_custom_call.1}
  #allocation0 [shape = 'u32[]', space=smem, size = 0x4, offset = 0x4, fixed_abs, tag = 'smem constant byte address 0x4 - core index']
  #allocation1 [shape = 'u32[72,128]{1,0:T(1,128)}', space=vmem, size = 0x9000, scoped, tag = 'internal scratch']
  %s0 = inlined_call_operand.hbm [shape: bf16[256,256], index: 0, kind: input, shape index: {}]
  %s1 = inlined_call_operand.hbm [shape: bf16[256,256], index: 1, kind: input, shape index: {}]
  %s2 = inlined_call_operand.hbm [shape: bf16[256,128], index: 2, kind: input, shape index: {}]
  %s3 = inlined_call_operand.hbm [shape: f32[4,256], index: 3, kind: input, shape index: {}]
  %s4 = inlined_call_operand.hbm [shape: f32[256,128], index: 4, kind: output, shape index: {}]
  %s5 = sld [smem:[#allocation0]]
  $region65: #{tpu_custom_call.1} parent=0
    _
  %s7 = ssub.s32 1, %s5
  %s8 = scalar_select 0, %s7, %s5
  $region1: #{tpu_custom_call.1} parent=0
    #allocation2 [shape = 'u8[131072]{0}', space=vmem, size = 0x20000, scoped, tag = 'input window, operand 0']
    #allocation3 [shape = 's32[2]{0}', space=sflag, size = 0x8, scoped, tag = 'scoped memory for tpu_custom_call.1']
    #allocation4 [shape = 's32[2]{0}', space=sflag, size = 0x8, scoped, tag = 'scoped memory for tpu_custom_call.1']
    #allocation5 [shape = 'u8[131072]{0}', space=vmem, size = 0x20000, scoped, tag = 'input window, operand 1, single buffered']
    #allocation6 [shape = 's32[1]{0}', space=sflag, size = 0x4, scoped, tag = 'scoped memory for tpu_custom_call.1']
    #allocation7 [shape = 'u8[65536]{0}', space=vmem, size = 0x10000, scoped, tag = 'input window, operand 2, single buffered']
    #allocation8 [shape = 'u8[4096]{0}', space=vmem, size = 0x1000, scoped, tag = 'input window, operand 3, single buffered']
    #allocation9 [shape = 's32[1]{0}', space=sflag, size = 0x4, scoped, tag = 'scoped memory for tpu_custom_call.1']
    #allocation10 [shape = 'u8[131072]{0}', space=vmem, size = 0x20000, scoped, tag = 'output window, operand 0']
    %9 = vsyncpa [#allocation3], 0
    %s10 = scalar_lea.sflag [#allocation3], 1
    %11 = vsyncpa %s10, 0
    %12 = vsyncpa [#allocation6], 0
    %13 = vsyncpa [#allocation9], 0
    %14 = vsyncpa [#allocation4], 0
    %s15 = scalar_lea.sflag [#allocation4], 1
    %16 = vsyncpa %s15, 0
    loop: start=0, step=1, limit=4
    $region2: #{tpu_custom_call.1} parent=1 // loop_pre_header
      _
    $region3: #{tpu_custom_call.1} parent=1 // loop_header
      %s18 = sphi 0, %s22
      %p19 = scmp.ge.s32.totalorder %s18, 4
      %s28 = sphi 0, %s30
      %s31 = sphi 0, %s28
      %s32 = sphi 0, %s31
      %s48 = sphi 0, %s32
      %s52 = sphi 0, %s52
      %s54 = sphi 0, %s52
      %s55 = sphi 0, %s54
      %s69 = sphi 0, %s55
      %s73 = sphi 0, %s73
      %s75 = sphi 0, %s73
      %s76 = sphi 0, %s75
      %s90 = sphi 0, %s76
      %s94 = sphi 0, %s94
      %s96 = sphi 0, %s94
      %s97 = sphi 0, %s96
      %s111 = sphi 0, %s97
      %s117 = sphi 0, %s119
      %s120 = sphi 0, %s117
      %s121 = sphi 0, %s120
      %s137 = sphi 0, %s121
    $region4: #{tpu_custom_call.1} parent=1 // loop_header_branch
      %21 = sbr.rel (%p19) target = $region8
    $region5: #{tpu_custom_call.1} parent=1 // loop_body
      %s23 = ssub.s32 %s18, 1
      %s24 = ssub.s32 %s18, 2
      %s25 = sadd.s32 %s18, 1
      %s26 = ssub.s32 %s18, %s25
      %p27 = scmp.eq.s32.totalorder %s26, 0
      %s29 = sadd.s32 %s28, 1
      %s30 = scalar_select %p27, %s28, %s29
      %p33 = pneg %p27
      %p34 = scmp.eq.s32.totalorder %s18, 1
      %p35 = por %p33, %p34
      %p36 = scmp.ne.s32.totalorder %s28, %s31
      %p37 = scmp.eq.s32.totalorder %s18, 0
      %p38 = por %p36, %p37
      %p39 = scmp.ne.s32.totalorder %s28, %s31
      %p40 = scmp.eq.s32.totalorder %s23, 1
      %p41 = por %p39, %p40
      %p42 = scmp.ne.s32.totalorder %s31, %s32
      %p43 = scmp.eq.s32.totalorder %s23, 0
      %p44 = por %p42, %p43
      %p45 = scmp.ne.s32.totalorder %s31, %s32
      %p46 = scmp.eq.s32.totalorder %s24, 1
      %p47 = por %p45, %p46
      %p49 = scmp.ne.s32.totalorder %s32, %s48
      %p50 = scmp.eq.s32.totalorder %s24, 0
      %p51 = por %p49, %p50
      %s53 = sadd.s32 %s52, 1
      %p56 = scmp.eq.s32.totalorder %s18, 1
      %p57 = scmp.ne.s32.totalorder %s52, %s54
      %p58 = scmp.eq.s32.totalorder %s18, 0
      %p59 = por %p57, %p58
      %p60 = scmp.ne.s32.totalorder %s52, %s54
      %p61 = scmp.eq.s32.totalorder %s23, 1
      %p62 = por %p60, %p61
      %p63 = scmp.ne.s32.totalorder %s54, %s55
      %p64 = scmp.eq.s32.totalorder %s23, 0
      %p65 = por %p63, %p64
      %p66 = scmp.ne.s32.totalorder %s54, %s55
      %p67 = scmp.eq.s32.totalorder %s24, 1
      %p68 = por %p66, %p67
      %p70 = scmp.ne.s32.totalorder %s55, %s69
      %p71 = scmp.eq.s32.totalorder %s24, 0
      %p72 = por %p70, %p71
      %s74 = sadd.s32 %s73, 1
      %p77 = scmp.eq.s32.totalorder %s18, 1
      %p78 = scmp.ne.s32.totalorder %s73, %s75
      %p79 = scmp.eq.s32.totalorder %s18, 0
      %p80 = por %p78, %p79
      %p81 = scmp.ne.s32.totalorder %s73, %s75
      %p82 = scmp.eq.s32.totalorder %s23, 1
      %p83 = por %p81, %p82
      %p84 = scmp.ne.s32.totalorder %s75, %s76
      %p85 = scmp.eq.s32.totalorder %s23, 0
      %p86 = por %p84, %p85
      %p87 = scmp.ne.s32.totalorder %s75, %s76
      %p88 = scmp.eq.s32.totalorder %s24, 1
      %p89 = por %p87, %p88
      %p91 = scmp.ne.s32.totalorder %s76, %s90
      %p92 = scmp.eq.s32.totalorder %s24, 0
      %p93 = por %p91, %p92
      %s95 = sadd.s32 %s94, 1
      %p98 = scmp.eq.s32.totalorder %s18, 1
      %p99 = scmp.ne.s32.totalorder %s94, %s96
      %p100 = scmp.eq.s32.totalorder %s18, 0
      %p101 = por %p99, %p100
      %p102 = scmp.ne.s32.totalorder %s94, %s96
      %p103 = scmp.eq.s32.totalorder %s23, 1
      %p104 = por %p102, %p103
      %p105 = scmp.ne.s32.totalorder %s96, %s97
      %p106 = scmp.eq.s32.totalorder %s23, 0
      %p107 = por %p105, %p106
      %p108 = scmp.ne.s32.totalorder %s96, %s97
      %p109 = scmp.eq.s32.totalorder %s24, 1
      %p110 = por %p108, %p109
      %p112 = scmp.ne.s32.totalorder %s97, %s111
      %p113 = scmp.eq.s32.totalorder %s24, 0
      %p114 = por %p112, %p113
      %s115 = ssub.s32 %s18, %s25
      %p116 = scmp.eq.s32.totalorder %s115, 0
      %s118 = sadd.s32 %s117, 1
      %s119 = scalar_select %p116, %s117, %s118
      %p122 = pneg %p116
      %p123 = scmp.eq.s32.totalorder %s18, 1
      %p124 = por %p122, %p123
      %p125 = scmp.ne.s32.totalorder %s117, %s120
      %p126 = scmp.eq.s32.totalorder %s18, 0
      %p127 = por %p125, %p126
      %p128 = scmp.ne.s32.totalorder %s117, %s120
      %p129 = scmp.eq.s32.totalorder %s23, 1
      %p130 = por %p128, %p129
      %p131 = scmp.ne.s32.totalorder %s120, %s121
      %p132 = scmp.eq.s32.totalorder %s23, 0
      %p133 = por %p131, %p132
      %p134 = scmp.ne.s32.totalorder %s120, %s121
      %p135 = scmp.eq.s32.totalorder %s24, 1
      %p136 = por %p134, %p135
      %p138 = scmp.ne.s32.totalorder %s121, %s137
      %p139 = scmp.eq.s32.totalorder %s24, 0
      %p140 = por %p138, %p139
      %p141 = scmp.le.s32.totalorder 1, %s18
      %p142 = scmp.lt.s32.totalorder %s18, 3
      %p143 = pnand %p141, %p142
      %p144 = pneg %p143
      // Predicated region
      $region9: #{tpu_custom_call.1} parent=5 // pred_check
        _
      $region10: #{tpu_custom_call.1} parent=5 // pred_check_branch
        %146 = sbr.rel (%p143) target = $region12
      $region11: #{tpu_custom_call.1} parent=5 // pred_region
        %s147 = ssub.s32 %s18, 1
        // Predicated region
        $region13: #{tpu_custom_call.1} parent=11 // pred_check
          %p148 = pneg %p65
        $region14: #{tpu_custom_call.1} parent=11 // pred_check_branch
          %150 = sbr.rel (%p148) target = $region16
        $region15: #{tpu_custom_call.1} parent=11 // pred_region
          %152 = vsyncadd [#allocation6], 0
          %s153 = sshll.u32 %s1, 4
          %s154 = int_to_ptr.hbm [resolvable:$true] %s153
          %s155 = sshll.u32 [#allocation5], 4
          %s156 = int_to_ptr.vmem [resolvable:$true] %s155
          %161 = dma.hbm_to_vmem [thread:$0]  %s154, 4096, %s156, [#allocation6], 128, 128, 8
        $region16: #{tpu_custom_call.1} parent=11 // pred_fallthru
          _
        // Predicated region
        $region17: #{tpu_custom_call.1} parent=11 // pred_check
          %p162 = pneg %p86
        $region18: #{tpu_custom_call.1} parent=11 // pred_check_branch
          %164 = sbr.rel (%p162) target = $region20
        $region19: #{tpu_custom_call.1} parent=11 // pred_region
          %166 = vsyncadd [#allocation6], 0
          %s167 = sshll.u32 %s2, 4
          %s168 = int_to_ptr.hbm [resolvable:$true] %s167
          %s169 = sshll.u32 [#allocation7], 4
          %s170 = int_to_ptr.vmem [resolvable:$true] %s169
          %175 = dma.hbm_to_vmem [thread:$0]  %s168, 2048, %s170, [#allocation6], 64, 64, 4
        $region20: #{tpu_custom_call.1} parent=11 // pred_fallthru
          _
        // Predicated region
        $region21: #{tpu_custom_call.1} parent=11 // pred_check
          %p176 = pneg %p107
        $region22: #{tpu_custom_call.1} parent=11 // pred_check_branch
          %178 = sbr.rel (%p176) target = $region24
        $region23: #{tpu_custom_call.1} parent=11 // pred_region
          %180 = vsyncadd [#allocation9], 0
          %s182 = sshll.u32 %s3, 4
          %s183 = int_to_ptr.hbm [resolvable:$true] %s182
          %s184 = sshll.u32 [#allocation8], 4
          %s185 = int_to_ptr.vmem [resolvable:$true] %s184
          %187 = dma.hbm_to_vmem [thread:$0]  %s183, 128, %s185, [#allocation9]
        $region24: #{tpu_custom_call.1} parent=11 // pred_fallthru
          _
      $region12: #{tpu_custom_call.1} parent=5 // pred_fallthru
        _
      %p188 = scmp.lt.s32.totalorder %s18, 2
      // Predicated region
      $region25: #{tpu_custom_call.1} parent=5 // pred_check
        %p189 = pneg %p188
      $region26: #{tpu_custom_call.1} parent=5 // pred_check_branch
        %191 = sbr.rel (%p189) target = $region28
      $region27: #{tpu_custom_call.1} parent=5 // pred_region
        // Predicated region
        $region29: #{tpu_custom_call.1} parent=27 // pred_check
          %p192 = pneg %p38
        $region30: #{tpu_custom_call.1} parent=27 // pred_check_branch
          %194 = sbr.rel (%p192) target = $region32
        $region31: #{tpu_custom_call.1} parent=27 // pred_region
          %s195 = sand.u32 %s28, 1
          %s196 = scalar_lea.sflag [#allocation3], %s195
          %s197 = sand.u32 %s28, 1
          %s198 = smul.addr %s197, 128
          %s199 = scalar_lea.vmem [#allocation2], %s198
          %s200 = smul.u32 16, %s18
          %202 = vsyncadd %s196, 0
          %s203 = smul.addr %s200, 2
          %s204 = smul.addr %s203, 4
          %s205 = scalar_lea.hbm %s0, %s204
          %s206 = sshll.u32 %s205, 4
          %s207 = int_to_ptr.hbm [resolvable:$true] %s206
          %s208 = sshll.u32 %s199, 4
          %s209 = int_to_ptr.vmem [resolvable:$true] %s208
          %214 = dma.hbm_to_vmem [thread:$0]  %s207, 2048, %s209, %s196, 128, 128, 8
        $region32: #{tpu_custom_call.1} parent=27 // pred_fallthru
          _
      $region28: #{tpu_custom_call.1} parent=5 // pred_fallthru
        _
      %p215 = scmp.le.s32.totalorder 1, %s18
      %p216 = scmp.lt.s32.totalorder %s18, 3
      %p217 = pnand %p215, %p216
      %p218 = pneg %p217
      // Predicated region
      $region33: #{tpu_custom_call.1} parent=5 // pred_check
        _
      $region34: #{tpu_custom_call.1} parent=5 // pred_check_branch
        %220 = sbr.rel (%p217) target = $region36
      $region35: #{tpu_custom_call.1} parent=5 // pred_region
        %s221 = ssub.s32 %s18, 1
        %s222 = sand.u32 %s31, 1
        %s223 = scalar_lea.sflag [#allocation3], %s222
        %s224 = sand.u32 %s31, 1
        %s225 = smul.addr %s224, 128
        %s226 = scalar_lea.vmem [#allocation2], %s225
        // Predicated region
        $region37: #{tpu_custom_call.1} parent=35 // pred_check
          %p227 = pneg %p44
        $region38: #{tpu_custom_call.1} parent=35 // pred_check_branch
          %229 = sbr.rel (%p227) target = $region40
        $region39: #{tpu_custom_call.1} parent=35 // pred_region
          %231 = dma.done %s223, 2048
        $region40: #{tpu_custom_call.1} parent=35 // pred_fallthru
          _
        // Predicated region
        $region41: #{tpu_custom_call.1} parent=35 // pred_check
          %p232 = pneg %p65
        $region42: #{tpu_custom_call.1} parent=35 // pred_check_branch
          %234 = sbr.rel (%p232) target = $region44
        $region43: #{tpu_custom_call.1} parent=35 // pred_region
          %236 = dma.done [#allocation6], 4096
        $region44: #{tpu_custom_call.1} parent=35 // pred_fallthru
          _
        // Predicated region
        $region45: #{tpu_custom_call.1} parent=35 // pred_check
          %p237 = pneg %p86
        $region46: #{tpu_custom_call.1} parent=35 // pred_check_branch
          %239 = sbr.rel (%p237) target = $region48
        $region47: #{tpu_custom_call.1} parent=35 // pred_region
          %241 = dma.done [#allocation6], 2048
        $region48: #{tpu_custom_call.1} parent=35 // pred_fallthru
          _
        // Predicated region
        $region49: #{tpu_custom_call.1} parent=35 // pred_check
          %p242 = pneg %p107
        $region50: #{tpu_custom_call.1} parent=35 // pred_check_branch
          %244 = sbr.rel (%p242) target = $region52
        $region51: #{tpu_custom_call.1} parent=35 // pred_region
          %246 = dma.done [#allocation9], 128
        $region52: #{tpu_custom_call.1} parent=35 // pred_fallthru
          _
        %s247 = sand.u32 %s31, 1
        %s248 = scalar_lea.sflag [#allocation3], %s247
        %s249 = sand.u32 %s31, 1
        %s250 = smul.addr %s249, 128
        %s251 = scalar_lea.vmem [#allocation2], %s250
        %p252 = pneg %p44
        %p253 = pneg %p41
        %p254 = pneg %p65
        %p255 = pneg %p62
        %p256 = pneg %p86
        %p257 = pneg %p83
        %p258 = pneg %p107
        %p259 = pneg %p104
        %p260 = pneg %p133
        %p261 = pneg %p130
        %s262 = sand.u32 %s120, 1
        %s263 = scalar_lea.sflag [#allocation4], %s262
        %s264 = sand.u32 %s120, 1
        %s265 = smul.addr %s264, 128
        %s266 = scalar_lea.vmem [#allocation10], %s265
        %s267 = smul.u32 16, %s23
        %s268 = smul.u32 16, %s23
        %v269 = vld [vmem:[%s226] sm:$0xff]
        %v270 = vld [vmem:[%s226 + $0x8] sm:$0xff]
        %v271 = vld [vmem:[%s226 + $0x10] sm:$0xff]
        %v272 = vld [vmem:[%s226 + $0x18] sm:$0xff]
        %v273 = vld [vmem:[%s226 + $0x20] sm:$0xff]
        %v274 = vld [vmem:[%s226 + $0x28] sm:$0xff]
        %v275 = vld [vmem:[%s226 + $0x30] sm:$0xff]
        %v276 = vld [vmem:[%s226 + $0x38] sm:$0xff]
        %v277 = vld [vmem:[%s226 + $0x40] sm:$0xff]
        %v278 = vld [vmem:[%s226 + $0x48] sm:$0xff]
        %v279 = vld [vmem:[%s226 + $0x50] sm:$0xff]
        %v280 = vld [vmem:[%s226 + $0x58] sm:$0xff]
        %v281 = vld [vmem:[%s226 + $0x60] sm:$0xff]
        %v282 = vld [vmem:[%s226 + $0x68] sm:$0xff]
        %v283 = vld [vmem:[%s226 + $0x70] sm:$0xff]
        %v284 = vld [vmem:[%s226 + $0x78] sm:$0xff]
        %v285 = vld [vmem:[#allocation5] sm:$0xff]
        %v286 = vld [vmem:[#allocation5 + $0x8] sm:$0xff]
        %v287 = vld [vmem:[#allocation5 + $0x10] sm:$0xff]
        %v288 = vld [vmem:[#allocation5 + $0x18] sm:$0xff]
        %v289 = vld [vmem:[#allocation5 + $0x20] sm:$0xff]
        %v290 = vld [vmem:[#allocation5 + $0x28] sm:$0xff]
        %v291 = vld [vmem:[#allocation5 + $0x30] sm:$0xff]
        %v292 = vld [vmem:[#allocation5 + $0x38] sm:$0xff]
        %v293 = vld [vmem:[#allocation5 + $0x40] sm:$0xff]
        %v294 = vld [vmem:[#allocation5 + $0x48] sm:$0xff]
        %v295 = vld [vmem:[#allocation5 + $0x50] sm:$0xff]
        %v296 = vld [vmem:[#allocation5 + $0x58] sm:$0xff]
        %v297 = vld [vmem:[#allocation5 + $0x60] sm:$0xff]
        %v298 = vld [vmem:[#allocation5 + $0x68] sm:$0xff]
        %v299 = vld [vmem:[#allocation5 + $0x70] sm:$0xff]
        %v300 = vld [vmem:[#allocation5 + $0x78] sm:$0xff]
        %v301 = vld [vmem:[#allocation5 + $0x80] sm:$0xff]
        %v302 = vld [vmem:[#allocation5 + $0x88] sm:$0xff]
        %v303 = vld [vmem:[#allocation5 + $0x90] sm:$0xff]
        %v304 = vld [vmem:[#allocation5 + $0x98] sm:$0xff]
        %v305 = vld [vmem:[#allocation5 + $0xa0] sm:$0xff]
        %v306 = vld [vmem:[#allocation5 + $0xa8] sm:$0xff]
        %v307 = vld [vmem:[#allocation5 + $0xb0] sm:$0xff]
        %v308 = vld [vmem:[#allocation5 + $0xb8] sm:$0xff]
        %v309 = vld [vmem:[#allocation5 + $0xc0] sm:$0xff]
        %v310 = vld [vmem:[#allocation5 + $0xc8] sm:$0xff]
        %v311 = vld [vmem:[#allocation5 + $0xd0] sm:$0xff]
        %v312 = vld [vmem:[#allocation5 + $0xd8] sm:$0xff]
        %v313 = vld [vmem:[#allocation5 + $0xe0] sm:$0xff]
        %v314 = vld [vmem:[#allocation5 + $0xe8] sm:$0xff]
        %v315 = vld [vmem:[#allocation5 + $0xf0] sm:$0xff]
        %v316 = vld [vmem:[#allocation5 + $0xf8] sm:$0xff]
        %v317 = vld [vmem:[#allocation8] ss:$4 sm:$0x3]
        %v319 = vperm.slane %v317, 0
        %v320 = vperm.slane %v317, 1
        %v339 = vunpack.c.l.b16 %v269
        %v340 = vunpack.c.h.b16 %v269
        %v341 = vunpack.c.l.b16 %v270
        %v342 = vunpack.c.h.b16 %v270
        %v343 = vunpack.c.l.b16 %v271
        %v344 = vunpack.c.h.b16 %v271
        %v345 = vunpack.c.l.b16 %v272
        %v346 = vunpack.c.h.b16 %v272
        %v347 = vunpack.c.l.b16 %v273
        %v348 = vunpack.c.h.b16 %v273
        %v349 = vunpack.c.l.b16 %v274
        %v350 = vunpack.c.h.b16 %v274
        %v351 = vunpack.c.l.b16 %v275
        %v352 = vunpack.c.h.b16 %v275
        %v353 = vunpack.c.l.b16 %v276
        %v354 = vunpack.c.h.b16 %v276
        %v355 = vunpack.c.l.b16 %v277
        %v356 = vunpack.c.h.b16 %v277
        %v357 = vunpack.c.l.b16 %v278
        %v358 = vunpack.c.h.b16 %v278
        %v359 = vunpack.c.l.b16 %v279
        %v360 = vunpack.c.h.b16 %v279
        %v361 = vunpack.c.l.b16 %v280
        %v362 = vunpack.c.h.b16 %v280
        %v363 = vunpack.c.l.b16 %v281
        %v364 = vunpack.c.h.b16 %v281
        %v365 = vunpack.c.l.b16 %v282
        %v366 = vunpack.c.h.b16 %v282
        %v367 = vunpack.c.l.b16 %v283
        %v368 = vunpack.c.h.b16 %v283
        %v369 = vunpack.c.l.b16 %v284
        %v370 = vunpack.c.h.b16 %v284
        %v371 = vpack.c.b16 %v341, %v339
        %v372 = vpack.c.b16 %v342, %v340
        %v373 = vpack.c.b16 %v345, %v343
        %v374 = vpack.c.b16 %v346, %v344
        %v375 = vpack.c.b16 %v349, %v347
        %v376 = vpack.c.b16 %v350, %v348
        %v377 = vpack.c.b16 %v353, %v351
        %v378 = vpack.c.b16 %v354, %v352
        %v379 = vpack.c.b16 %v357, %v355
        %v380 = vpack.c.b16 %v358, %v356
        %v381 = vpack.c.b16 %v361, %v359
        %v382 = vpack.c.b16 %v362, %v360
        %v383 = vpack.c.b16 %v365, %v363
        %v384 = vpack.c.b16 %v366, %v364
        %v385 = vpack.c.b16 %v369, %v367
        %v386 = vpack.c.b16 %v370, %v368
        %v435 = vunpack.c.l.b16 %v285
        %v436 = vunpack.c.h.b16 %v285
        %v437 = vunpack.c.l.b16 %v286
        %v438 = vunpack.c.h.b16 %v286
        %v439 = vunpack.c.l.b16 %v287
        %v440 = vunpack.c.h.b16 %v287
        %v441 = vunpack.c.l.b16 %v288
        %v442 = vunpack.c.h.b16 %v288
        %v443 = vunpack.c.l.b16 %v289
        %v444 = vunpack.c.h.b16 %v289
        %v445 = vunpack.c.l.b16 %v290
        %v446 = vunpack.c.h.b16 %v290
        %v447 = vunpack.c.l.b16 %v291
        %v448 = vunpack.c.h.b16 %v291
        %v449 = vunpack.c.l.b16 %v292
        %v450 = vunpack.c.h.b16 %v292
        %v451 = vunpack.c.l.b16 %v293
        %v452 = vunpack.c.h.b16 %v293
        %v453 = vunpack.c.l.b16 %v294
        %v454 = vunpack.c.h.b16 %v294
        %v455 = vunpack.c.l.b16 %v295
        %v456 = vunpack.c.h.b16 %v295
        %v457 = vunpack.c.l.b16 %v296
        %v458 = vunpack.c.h.b16 %v296
        %v459 = vunpack.c.l.b16 %v297
        %v460 = vunpack.c.h.b16 %v297
        %v461 = vunpack.c.l.b16 %v298
        %v462 = vunpack.c.h.b16 %v298
        %v463 = vunpack.c.l.b16 %v299
        %v464 = vunpack.c.h.b16 %v299
        %v465 = vunpack.c.l.b16 %v300
        %v466 = vunpack.c.h.b16 %v300
        %v467 = vunpack.c.l.b16 %v301
        %v468 = vunpack.c.h.b16 %v301
        %v469 = vunpack.c.l.b16 %v302
        %v470 = vunpack.c.h.b16 %v302
        %v471 = vunpack.c.l.b16 %v303
        %v472 = vunpack.c.h.b16 %v303
        %v473 = vunpack.c.l.b16 %v304
        %v474 = vunpack.c.h.b16 %v304
        %v475 = vunpack.c.l.b16 %v305
        %v476 = vunpack.c.h.b16 %v305
        %v477 = vunpack.c.l.b16 %v306
        %v478 = vunpack.c.h.b16 %v306
        %v479 = vunpack.c.l.b16 %v307
        %v480 = vunpack.c.h.b16 %v307
        %v481 = vunpack.c.l.b16 %v308
        %v482 = vunpack.c.h.b16 %v308
        %v483 = vunpack.c.l.b16 %v309
        %v484 = vunpack.c.h.b16 %v309
        %v485 = vunpack.c.l.b16 %v310
        %v486 = vunpack.c.h.b16 %v310
        %v487 = vunpack.c.l.b16 %v311
        %v488 = vunpack.c.h.b16 %v311
        %v489 = vunpack.c.l.b16 %v312
        %v490 = vunpack.c.h.b16 %v312
        %v491 = vunpack.c.l.b16 %v313
        %v492 = vunpack.c.h.b16 %v313
        %v493 = vunpack.c.l.b16 %v314
        %v494 = vunpack.c.h.b16 %v314
        %v495 = vunpack.c.l.b16 %v315
        %v496 = vunpack.c.h.b16 %v315
        %v497 = vunpack.c.l.b16 %v316
        %v498 = vunpack.c.h.b16 %v316
        %v499 = vpack.c.b16 %v437, %v435
        %v500 = vpack.c.b16 %v438, %v436
        %v501 = vpack.c.b16 %v441, %v439
        %v502 = vpack.c.b16 %v442, %v440
        %v503 = vpack.c.b16 %v445, %v443
        %v504 = vpack.c.b16 %v446, %v444
        %v505 = vpack.c.b16 %v449, %v447
        %v506 = vpack.c.b16 %v450, %v448
        %v507 = vpack.c.b16 %v453, %v451
        %v508 = vpack.c.b16 %v454, %v452
        %v509 = vpack.c.b16 %v457, %v455
        %v510 = vpack.c.b16 %v458, %v456
        %v511 = vpack.c.b16 %v461, %v459
        %v512 = vpack.c.b16 %v462, %v460
        %v513 = vpack.c.b16 %v465, %v463
        %v514 = vpack.c.b16 %v466, %v464
        %v515 = vpack.c.b16 %v469, %v467
        %v516 = vpack.c.b16 %v470, %v468
        %v517 = vpack.c.b16 %v473, %v471
        %v518 = vpack.c.b16 %v474, %v472
        %v519 = vpack.c.b16 %v477, %v475
        %v520 = vpack.c.b16 %v478, %v476
        %v521 = vpack.c.b16 %v481, %v479
        %v522 = vpack.c.b16 %v482, %v480
        %v523 = vpack.c.b16 %v485, %v483
        %v524 = vpack.c.b16 %v486, %v484
        %v525 = vpack.c.b16 %v489, %v487
        %v526 = vpack.c.b16 %v490, %v488
        %v527 = vpack.c.b16 %v493, %v491
        %v528 = vpack.c.b16 %v494, %v492
        %v529 = vpack.c.b16 %v497, %v495
        %v530 = vpack.c.b16 %v498, %v496
        %563 = vmatpush.bf16.msra.mxu0 %v513
        %564 = vmatpush.bf16.msra.mxu0 %v511
        %565 = vmatpush.bf16.msra.mxu0 %v509
        %566 = vmatpush.bf16.msra.mxu0 %v507
        %567 = vmatpush.bf16.msra.mxu0 %v505
        %568 = vmatpush.bf16.msra.mxu0 %v503
        %569 = vmatpush.bf16.msra.mxu0 %v501
        %570 = vmatpush.bf16.msra.mxu0 %v499
        %571 = vmatmul.bf16.gmra.mxu0 %v371
        %v572 = vpop.f32.mrf.mxu0
        %v573 = vadd.f32 %v319, %v572
        %v574 = vpop.f32.mrf.mxu0
        %v575 = vadd.f32 %v319, %v574
        %576 = vmatmul.bf16.gmra.mxu0 %v373
        %v577 = vpop.f32.mrf.mxu0
        %v578 = vadd.f32 %v319, %v577
        %v579 = vpop.f32.mrf.mxu0
        %v580 = vadd.f32 %v319, %v579
        %581 = vmatmul.bf16.gmra.mxu0 %v375
        %v582 = vpop.f32.mrf.mxu0
        %v583 = vadd.f32 %v319, %v582
        %v584 = vpop.f32.mrf.mxu0
        %v585 = vadd.f32 %v319, %v584
        %586 = vmatmul.bf16.gmra.mxu0 %v377
        %v587 = vpop.f32.mrf.mxu0
        %v588 = vadd.f32 %v319, %v587
        %v589 = vpop.f32.mrf.mxu0
        %v590 = vadd.f32 %v319, %v589
        %591 = vmatmul.bf16.gmra.mxu0 %v379
        %v592 = vpop.f32.mrf.mxu0
        %v593 = vadd.f32 %v319, %v592
        %v594 = vpop.f32.mrf.mxu0
        %v595 = vadd.f32 %v319, %v594
        %596 = vmatmul.bf16.gmra.mxu0 %v381
        %v597 = vpop.f32.mrf.mxu0
        %v598 = vadd.f32 %v319, %v597
        %v599 = vpop.f32.mrf.mxu0
        %v600 = vadd.f32 %v319, %v599
        %601 = vmatmul.bf16.gmra.mxu0 %v383
        %v602 = vpop.f32.mrf.mxu0
        %v603 = vadd.f32 %v319, %v602
        %v604 = vpop.f32.mrf.mxu0
        %v605 = vadd.f32 %v319, %v604
        %606 = vmatmul.bf16.gmra.mxu0 %v385
        %v607 = vpop.f32.mrf.mxu0
        %v608 = vadd.f32 %v319, %v607
        %v609 = vpop.f32.mrf.mxu0
        %v610 = vadd.f32 %v319, %v609
        %611 = vdwg.mxu0
        %612 = vmatpush.bf16.msra.mxu0 %v529
        %613 = vmatpush.bf16.msra.mxu0 %v527
        %614 = vmatpush.bf16.msra.mxu0 %v525
        %615 = vmatpush.bf16.msra.mxu0 %v523
        %616 = vmatpush.bf16.msra.mxu0 %v521
        %617 = vmatpush.bf16.msra.mxu0 %v519
        %618 = vmatpush.bf16.msra.mxu0 %v517
        %619 = vmatpush.bf16.msra.mxu0 %v515
        %620 = vmatmul.bf16.gmra.mxu0 %v372
        %v621 = vpop.f32.mrf.mxu0
        %v622 = vadd.f32 %v573, %v621
        %v623 = vpop.f32.mrf.mxu0
        %v624 = vadd.f32 %v575, %v623
        %625 = vmatmul.bf16.gmra.mxu0 %v374
        %v626 = vpop.f32.mrf.mxu0
        %v627 = vadd.f32 %v578, %v626
        %v628 = vpop.f32.mrf.mxu0
        %v629 = vadd.f32 %v580, %v628
        %630 = vmatmul.bf16.gmra.mxu0 %v376
        %v631 = vpop.f32.mrf.mxu0
        %v632 = vadd.f32 %v583, %v631
        %v633 = vpop.f32.mrf.mxu0
        %v634 = vadd.f32 %v585, %v633
        %635 = vmatmul.bf16.gmra.mxu0 %v378
        %v636 = vpop.f32.mrf.mxu0
        %v637 = vadd.f32 %v588, %v636
        %v638 = vpop.f32.mrf.mxu0
        %v639 = vadd.f32 %v590, %v638
        %640 = vmatmul.bf16.gmra.mxu0 %v380
        %v641 = vpop.f32.mrf.mxu0
        %v642 = vadd.f32 %v593, %v641
        %v643 = vpop.f32.mrf.mxu0
        %v644 = vadd.f32 %v595, %v643
        %645 = vmatmul.bf16.gmra.mxu0 %v382
        %v646 = vpop.f32.mrf.mxu0
        %v647 = vadd.f32 %v598, %v646
        %v648 = vpop.f32.mrf.mxu0
        %v649 = vadd.f32 %v600, %v648
        %650 = vmatmul.bf16.gmra.mxu0 %v384
        %v651 = vpop.f32.mrf.mxu0
        %v652 = vadd.f32 %v603, %v651
        %v653 = vpop.f32.mrf.mxu0
        %v654 = vadd.f32 %v605, %v653
        %655 = vmatmul.bf16.gmra.mxu0 %v386
        %v656 = vpop.f32.mrf.mxu0
        %v657 = vadd.f32 %v608, %v656
        %v658 = vpop.f32.mrf.mxu0
        %v659 = vadd.f32 %v610, %v658
        %660 = vdwg.mxu0
        %661 = vmatpush.bf16.msra.mxu0 %v514
        %662 = vmatpush.bf16.msra.mxu0 %v512
        %663 = vmatpush.bf16.msra.mxu0 %v510
        %664 = vmatpush.bf16.msra.mxu0 %v508
        %665 = vmatpush.bf16.msra.mxu0 %v506
        %666 = vmatpush.bf16.msra.mxu0 %v504
        %667 = vmatpush.bf16.msra.mxu0 %v502
        %668 = vmatpush.bf16.msra.mxu0 %v500
        %669 = vmatmul.bf16.gmra.mxu0 %v371
        %v670 = vpop.f32.mrf.mxu0
        %v671 = vadd.f32 %v320, %v670
        %v672 = vpop.f32.mrf.mxu0
        %v673 = vadd.f32 %v320, %v672
        %674 = vmatmul.bf16.gmra.mxu0 %v373
        %v675 = vpop.f32.mrf.mxu0
        %v676 = vadd.f32 %v320, %v675
        %v677 = vpop.f32.mrf.mxu0
        %v678 = vadd.f32 %v320, %v677
        %679 = vmatmul.bf16.gmra.mxu0 %v375
        %v680 = vpop.f32.mrf.mxu0
        %v681 = vadd.f32 %v320, %v680
        %v682 = vpop.f32.mrf.mxu0
        %v683 = vadd.f32 %v320, %v682
        %684 = vmatmul.bf16.gmra.mxu0 %v377
        %v685 = vpop.f32.mrf.mxu0
        %v686 = vadd.f32 %v320, %v685
        %v687 = vpop.f32.mrf.mxu0
        %v688 = vadd.f32 %v320, %v687
        %689 = vmatmul.bf16.gmra.mxu0 %v379
        %v690 = vpop.f32.mrf.mxu0
        %v691 = vadd.f32 %v320, %v690
        %v692 = vpop.f32.mrf.mxu0
        %v693 = vadd.f32 %v320, %v692
        %694 = vmatmul.bf16.gmra.mxu0 %v381
        %v695 = vpop.f32.mrf.mxu0
        %v696 = vadd.f32 %v320, %v695
        %v697 = vpop.f32.mrf.mxu0
        %v698 = vadd.f32 %v320, %v697
        %699 = vmatmul.bf16.gmra.mxu0 %v383
        %v700 = vpop.f32.mrf.mxu0
        %v701 = vadd.f32 %v320, %v700
        %v702 = vpop.f32.mrf.mxu0
        %v703 = vadd.f32 %v320, %v702
        %704 = vmatmul.bf16.gmra.mxu0 %v385
        %v705 = vpop.f32.mrf.mxu0
        %v706 = vadd.f32 %v320, %v705
        %v707 = vpop.f32.mrf.mxu0
        %v708 = vadd.f32 %v320, %v707
        %709 = vdwg.mxu0
        %710 = vmatpush.bf16.msra.mxu0 %v530
        %711 = vmatpush.bf16.msra.mxu0 %v528
        %712 = vmatpush.bf16.msra.mxu0 %v526
        %713 = vmatpush.bf16.msra.mxu0 %v524
        %714 = vmatpush.bf16.msra.mxu0 %v522
        %715 = vmatpush.bf16.msra.mxu0 %v520
        %716 = vmatpush.bf16.msra.mxu0 %v518
        %717 = vmatpush.bf16.msra.mxu0 %v516
        %718 = vmatmul.bf16.gmra.mxu0 %v372
        %v719 = vpop.f32.mrf.mxu0
        %v720 = vadd.f32 %v671, %v719
        %v721 = vpop.f32.mrf.mxu0
        %v722 = vadd.f32 %v673, %v721
        %723 = vmatmul.bf16.gmra.mxu0 %v374
        %v724 = vpop.f32.mrf.mxu0
        %v725 = vadd.f32 %v676, %v724
        %v726 = vpop.f32.mrf.mxu0
        %v727 = vadd.f32 %v678, %v726
        %728 = vmatmul.bf16.gmra.mxu0 %v376
        %v729 = vpop.f32.mrf.mxu0
        %v730 = vadd.f32 %v681, %v729
        %v731 = vpop.f32.mrf.mxu0
        %v732 = vadd.f32 %v683, %v731
        %733 = vmatmul.bf16.gmra.mxu0 %v378
        %v734 = vpop.f32.mrf.mxu0
        %v735 = vadd.f32 %v686, %v734
        %v736 = vpop.f32.mrf.mxu0
        %v737 = vadd.f32 %v688, %v736
        %738 = vmatmul.bf16.gmra.mxu0 %v380
        %v739 = vpop.f32.mrf.mxu0
        %v740 = vadd.f32 %v691, %v739
        %v741 = vpop.f32.mrf.mxu0
        %v742 = vadd.f32 %v693, %v741
        %743 = vmatmul.bf16.gmra.mxu0 %v382
        %v744 = vpop.f32.mrf.mxu0
        %v745 = vadd.f32 %v696, %v744
        %v746 = vpop.f32.mrf.mxu0
        %v747 = vadd.f32 %v698, %v746
        %748 = vmatmul.bf16.gmra.mxu0 %v384
        %v749 = vpop.f32.mrf.mxu0
        %v750 = vadd.f32 %v701, %v749
        %v751 = vpop.f32.mrf.mxu0
        %v752 = vadd.f32 %v703, %v751
        %753 = vmatmul.bf16.gmra.mxu0 %v386
        %v754 = vpop.f32.mrf.mxu0
        %v755 = vadd.f32 %v706, %v754
        %v756 = vpop.f32.mrf.mxu0
        %v757 = vadd.f32 %v708, %v756
        %758 = vdwg.mxu0
        %v759 = vadd.f32 %v622, %v720
        %760 = vadd.xlane.f32.xlu0 %v759
        %v761 = vpop.xlane.xlu0 %760
        %v762 = vadd.f32 %v624, %v722
        %763 = vadd.xlane.f32.xlu0 %v762
        %v764 = vpop.xlane.xlu0 %763
        %v765 = vadd.f32 %v627, %v725
        %766 = vadd.xlane.f32.xlu0 %v765
        %v767 = vpop.xlane.xlu0 %766
        %v768 = vadd.f32 %v629, %v727
        %769 = vadd.xlane.f32.xlu0 %v768
        %v770 = vpop.xlane.xlu0 %769
        %v771 = vadd.f32 %v632, %v730
        %772 = vadd.xlane.f32.xlu0 %v771
        %v773 = vpop.xlane.xlu0 %772
        %v774 = vadd.f32 %v634, %v732
        %775 = vadd.xlane.f32.xlu0 %v774
        %v776 = vpop.xlane.xlu0 %775
        %v777 = vadd.f32 %v637, %v735
        %778 = vadd.xlane.f32.xlu0 %v777
        %v779 = vpop.xlane.xlu0 %778
        %v780 = vadd.f32 %v639, %v737
        %781 = vadd.xlane.f32.xlu0 %v780
        %v782 = vpop.xlane.xlu0 %781
        %v783 = vadd.f32 %v642, %v740
        %784 = vadd.xlane.f32.xlu0 %v783
        %v785 = vpop.xlane.xlu0 %784
        %v786 = vadd.f32 %v644, %v742
        %787 = vadd.xlane.f32.xlu0 %v786
        %v788 = vpop.xlane.xlu0 %787
        %v789 = vadd.f32 %v647, %v745
        %790 = vadd.xlane.f32.xlu0 %v789
        %v791 = vpop.xlane.xlu0 %790
        %v792 = vadd.f32 %v649, %v747
        %793 = vadd.xlane.f32.xlu0 %v792
        %v794 = vpop.xlane.xlu0 %793
        %v795 = vadd.f32 %v652, %v750
        %796 = vadd.xlane.f32.xlu0 %v795
        %v797 = vpop.xlane.xlu0 %796
        %v798 = vadd.f32 %v654, %v752
        %799 = vadd.xlane.f32.xlu0 %v798
        %v800 = vpop.xlane.xlu0 %799
        %v801 = vadd.f32 %v657, %v755
        %802 = vadd.xlane.f32.xlu0 %v801
        %v803 = vpop.xlane.xlu0 %802
        %v804 = vadd.f32 %v659, %v757
        %805 = vadd.xlane.f32.xlu0 %v804
        %v806 = vpop.xlane.xlu0 %805
        %v807 = vmul.f32 %v622, %v622
        %v808 = vmul.f32 %v720, %v720
        %v809 = vmul.f32 %v624, %v624
        %v810 = vmul.f32 %v722, %v722
        %v811 = vmul.f32 %v627, %v627
        %v812 = vmul.f32 %v725, %v725
        %v813 = vmul.f32 %v629, %v629
        %v814 = vmul.f32 %v727, %v727
        %v815 = vmul.f32 %v632, %v632
        %v816 = vmul.f32 %v730, %v730
        %v817 = vmul.f32 %v634, %v634
        %v818 = vmul.f32 %v732, %v732
        %v819 = vmul.f32 %v637, %v637
        %v820 = vmul.f32 %v735, %v735
        %v821 = vmul.f32 %v639, %v639
        %v822 = vmul.f32 %v737, %v737
        %v823 = vmul.f32 %v642, %v642
        %v824 = vmul.f32 %v740, %v740
        %v825 = vmul.f32 %v644, %v644
        %v826 = vmul.f32 %v742, %v742
        %v827 = vmul.f32 %v647, %v647
        %v828 = vmul.f32 %v745, %v745
        %v829 = vmul.f32 %v649, %v649
        %v830 = vmul.f32 %v747, %v747
        %v831 = vmul.f32 %v652, %v652
        %v832 = vmul.f32 %v750, %v750
        %v833 = vmul.f32 %v654, %v654
        %v834 = vmul.f32 %v752, %v752
        %v835 = vmul.f32 %v657, %v657
        %v836 = vmul.f32 %v755, %v755
        %v837 = vmul.f32 %v659, %v659
        %v838 = vmul.f32 %v757, %v757
        %v839 = vadd.f32 %v807, %v808
        %840 = vadd.xlane.f32.xlu0 %v839
        %v841 = vpop.xlane.xlu0 %840
        %v842 = vadd.f32 %v809, %v810
        %843 = vadd.xlane.f32.xlu0 %v842
        %v844 = vpop.xlane.xlu0 %843
        %v845 = vadd.f32 %v811, %v812
        %846 = vadd.xlane.f32.xlu0 %v845
        %v847 = vpop.xlane.xlu0 %846
        %v848 = vadd.f32 %v813, %v814
        %849 = vadd.xlane.f32.xlu0 %v848
        %v850 = vpop.xlane.xlu0 %849
        %v851 = vadd.f32 %v815, %v816
        %852 = vadd.xlane.f32.xlu0 %v851
        %v853 = vpop.xlane.xlu0 %852
        %v854 = vadd.f32 %v817, %v818
        %855 = vadd.xlane.f32.xlu0 %v854
        %v856 = vpop.xlane.xlu0 %855
        %v857 = vadd.f32 %v819, %v820
        %858 = vadd.xlane.f32.xlu0 %v857
        %v859 = vpop.xlane.xlu0 %858
        %v860 = vadd.f32 %v821, %v822
        %861 = vadd.xlane.f32.xlu0 %v860
        %v862 = vpop.xlane.xlu0 %861
        %v863 = vadd.f32 %v823, %v824
        %864 = vadd.xlane.f32.xlu0 %v863
        %v865 = vpop.xlane.xlu0 %864
        %v866 = vadd.f32 %v825, %v826
        %867 = vadd.xlane.f32.xlu0 %v866
        %v868 = vpop.xlane.xlu0 %867
        %v869 = vadd.f32 %v827, %v828
        %870 = vadd.xlane.f32.xlu0 %v869
        %v871 = vpop.xlane.xlu0 %870
        %v872 = vadd.f32 %v829, %v830
        %873 = vadd.xlane.f32.xlu0 %v872
        %v874 = vpop.xlane.xlu0 %873
        %v875 = vadd.f32 %v831, %v832
        %876 = vadd.xlane.f32.xlu0 %v875
        %v877 = vpop.xlane.xlu0 %876
        %v878 = vadd.f32 %v833, %v834
        %879 = vadd.xlane.f32.xlu0 %v878
        %v880 = vpop.xlane.xlu0 %879
        %v881 = vadd.f32 %v835, %v836
        %882 = vadd.xlane.f32.xlu0 %v881
        %v883 = vpop.xlane.xlu0 %882
        %v884 = vadd.f32 %v837, %v838
        %885 = vadd.xlane.f32.xlu0 %v884
        %v886 = vpop.xlane.xlu0 %885
        %v887 = vmul.f32 %v761, 0.00390625
        %v888 = vmul.f32 %v764, 0.00390625
        %v889 = vmul.f32 %v767, 0.00390625
        %v890 = vmul.f32 %v770, 0.00390625
        %v891 = vmul.f32 %v773, 0.00390625
        %v892 = vmul.f32 %v776, 0.00390625
        %v893 = vmul.f32 %v779, 0.00390625
        %v894 = vmul.f32 %v782, 0.00390625
        %v895 = vmul.f32 %v785, 0.00390625
        %v896 = vmul.f32 %v788, 0.00390625
        %v897 = vmul.f32 %v791, 0.00390625
        %v898 = vmul.f32 %v794, 0.00390625
        %v899 = vmul.f32 %v797, 0.00390625
        %v900 = vmul.f32 %v800, 0.00390625
        %v901 = vmul.f32 %v803, 0.00390625
        %v902 = vmul.f32 %v806, 0.00390625
        %v903 = vmul.f32 %v841, 0.00390625
        %v904 = vmul.f32 %v844, 0.00390625
        %v905 = vmul.f32 %v847, 0.00390625
        %v906 = vmul.f32 %v850, 0.00390625
        %v907 = vmul.f32 %v853, 0.00390625
        %v908 = vmul.f32 %v856, 0.00390625
        %v909 = vmul.f32 %v859, 0.00390625
        %v910 = vmul.f32 %v862, 0.00390625
        %v911 = vmul.f32 %v865, 0.00390625
        %v912 = vmul.f32 %v868, 0.00390625
        %v913 = vmul.f32 %v871, 0.00390625
        %v914 = vmul.f32 %v874, 0.00390625
        %v915 = vmul.f32 %v877, 0.00390625
        %v916 = vmul.f32 %v880, 0.00390625
        %v917 = vmul.f32 %v883, 0.00390625
        %v918 = vmul.f32 %v886, 0.00390625
        %v919 = vmul.f32 %v887, %v887
        %v920 = vmul.f32 %v888, %v888
        %v921 = vmul.f32 %v889, %v889
        %v922 = vmul.f32 %v890, %v890
        %v923 = vmul.f32 %v891, %v891
        %v924 = vmul.f32 %v892, %v892
        %v925 = vmul.f32 %v893, %v893
        %v926 = vmul.f32 %v894, %v894
        %v927 = vmul.f32 %v895, %v895
        %v928 = vmul.f32 %v896, %v896
        %v929 = vmul.f32 %v897, %v897
        %v930 = vmul.f32 %v898, %v898
        %v931 = vmul.f32 %v899, %v899
        %v932 = vmul.f32 %v900, %v900
        %v933 = vmul.f32 %v901, %v901
        %v934 = vmul.f32 %v902, %v902
        %v935 = vsub.f32 %v903, %v919
        %v936 = vsub.f32 %v904, %v920
        %v937 = vsub.f32 %v905, %v921
        %v938 = vsub.f32 %v906, %v922
        %v939 = vsub.f32 %v907, %v923
        %v940 = vsub.f32 %v908, %v924
        %v941 = vsub.f32 %v909, %v925
        %v942 = vsub.f32 %v910, %v926
        %v943 = vsub.f32 %v911, %v927
        %v944 = vsub.f32 %v912, %v928
        %v945 = vsub.f32 %v913, %v929
        %v946 = vsub.f32 %v914, %v930
        %v947 = vsub.f32 %v915, %v931
        %v948 = vsub.f32 %v916, %v932
        %v949 = vsub.f32 %v917, %v933
        %v950 = vsub.f32 %v918, %v934
        %v951 = vmax.f32 %v935, 0.0
        %v952 = vmax.f32 %v936, 0.0
        %v953 = vmax.f32 %v937, 0.0
        %v954 = vmax.f32 %v938, 0.0
        %v955 = vmax.f32 %v939, 0.0
        %v956 = vmax.f32 %v940, 0.0
        %v957 = vmax.f32 %v941, 0.0
        %v958 = vmax.f32 %v942, 0.0
        %v959 = vmax.f32 %v943, 0.0
        %v960 = vmax.f32 %v944, 0.0
        %v961 = vmax.f32 %v945, 0.0
        %v962 = vmax.f32 %v946, 0.0
        %v963 = vmax.f32 %v947, 0.0
        %v964 = vmax.f32 %v948, 0.0
        %v965 = vmax.f32 %v949, 0.0
        %v966 = vmax.f32 %v950, 0.0
        %v967 = vsub.f32 %v622, %v887
        %v968 = vsub.f32 %v720, %v887
        %v969 = vsub.f32 %v624, %v888
        %v970 = vsub.f32 %v722, %v888
        %v971 = vsub.f32 %v627, %v889
        %v972 = vsub.f32 %v725, %v889
        %v973 = vsub.f32 %v629, %v890
        %v974 = vsub.f32 %v727, %v890
        %v975 = vsub.f32 %v632, %v891
        %v976 = vsub.f32 %v730, %v891
        %v977 = vsub.f32 %v634, %v892
        %v978 = vsub.f32 %v732, %v892
        %v979 = vsub.f32 %v637, %v893
        %v980 = vsub.f32 %v735, %v893
        %v981 = vsub.f32 %v639, %v894
        %v982 = vsub.f32 %v737, %v894
        %v983 = vsub.f32 %v642, %v895
        %v984 = vsub.f32 %v740, %v895
        %v985 = vsub.f32 %v644, %v896
        %v986 = vsub.f32 %v742, %v896
        %v987 = vsub.f32 %v647, %v897
        %v988 = vsub.f32 %v745, %v897
        %v989 = vsub.f32 %v649, %v898
        %v990 = vsub.f32 %v747, %v898
        %v991 = vsub.f32 %v652, %v899
        %v992 = vsub.f32 %v750, %v899
        %v993 = vsub.f32 %v654, %v900
        %v994 = vsub.f32 %v752, %v900
        %v995 = vsub.f32 %v657, %v901
        %v996 = vsub.f32 %v755, %v901
        %v997 = vsub.f32 %v659, %v902
        %v998 = vsub.f32 %v757, %v902
        %v999 = vadd.f32 %v951, 1e-05
        %v1000 = vadd.f32 %v952, 1e-05
        %v1001 = vadd.f32 %v953, 1e-05
        %v1002 = vadd.f32 %v954, 1e-05
        %v1003 = vadd.f32 %v955, 1e-05
        %v1004 = vadd.f32 %v956, 1e-05
        %v1005 = vadd.f32 %v957, 1e-05
        %v1006 = vadd.f32 %v958, 1e-05
        %v1007 = vadd.f32 %v959, 1e-05
        %v1008 = vadd.f32 %v960, 1e-05
        %v1009 = vadd.f32 %v961, 1e-05
        %v1010 = vadd.f32 %v962, 1e-05
        %v1011 = vadd.f32 %v963, 1e-05
        %v1012 = vadd.f32 %v964, 1e-05
        %v1013 = vadd.f32 %v965, 1e-05
        %v1014 = vadd.f32 %v966, 1e-05
        %v1015 = vrsqrt.pop %v999
        %v1016 = vmul.f32 %v1015, %v999
        %v1017 = vmul.f32 %v1016, %v1015
        %v1018 = vmul.f32 0.5, %v1017
        %v1019 = vsub.f32 1.5, %v1018
        %v1020 = vmul.f32 %v1015, %v1019
        %vm1021 = vweird.f32 %v999
        %vm1022 = vweird.f32 %v1015
        %vm1023 = vmor %vm1021, %vm1022
        %v1024 = vsel %vm1023, %v1015, %v1020
        %v1025 = vrsqrt.pop %v1000
        %v1026 = vmul.f32 %v1025, %v1000
        %v1027 = vmul.f32 %v1026, %v1025
        %v1028 = vmul.f32 0.5, %v1027
        %v1029 = vsub.f32 1.5, %v1028
        %v1030 = vmul.f32 %v1025, %v1029
        %vm1031 = vweird.f32 %v1000
        %vm1032 = vweird.f32 %v1025
        %vm1033 = vmor %vm1031, %vm1032
        %v1034 = vsel %vm1033, %v1025, %v1030
        %v1035 = vrsqrt.pop %v1001
        %v1036 = vmul.f32 %v1035, %v1001
        %v1037 = vmul.f32 %v1036, %v1035
        %v1038 = vmul.f32 0.5, %v1037
        %v1039 = vsub.f32 1.5, %v1038
        %v1040 = vmul.f32 %v1035, %v1039
        %vm1041 = vweird.f32 %v1001
        %vm1042 = vweird.f32 %v1035
        %vm1043 = vmor %vm1041, %vm1042
        %v1044 = vsel %vm1043, %v1035, %v1040
        %v1045 = vrsqrt.pop %v1002
        %v1046 = vmul.f32 %v1045, %v1002
        %v1047 = vmul.f32 %v1046, %v1045
        %v1048 = vmul.f32 0.5, %v1047
        %v1049 = vsub.f32 1.5, %v1048
        %v1050 = vmul.f32 %v1045, %v1049
        %vm1051 = vweird.f32 %v1002
        %vm1052 = vweird.f32 %v1045
        %vm1053 = vmor %vm1051, %vm1052
        %v1054 = vsel %vm1053, %v1045, %v1050
        %v1055 = vrsqrt.pop %v1003
        %v1056 = vmul.f32 %v1055, %v1003
        %v1057 = vmul.f32 %v1056, %v1055
        %v1058 = vmul.f32 0.5, %v1057
        %v1059 = vsub.f32 1.5, %v1058
        %v1060 = vmul.f32 %v1055, %v1059
        %vm1061 = vweird.f32 %v1003
        %vm1062 = vweird.f32 %v1055
        %vm1063 = vmor %vm1061, %vm1062
        %v1064 = vsel %vm1063, %v1055, %v1060
        %v1065 = vrsqrt.pop %v1004
        %v1066 = vmul.f32 %v1065, %v1004
        %v1067 = vmul.f32 %v1066, %v1065
        %v1068 = vmul.f32 0.5, %v1067
        %v1069 = vsub.f32 1.5, %v1068
        %v1070 = vmul.f32 %v1065, %v1069
        %vm1071 = vweird.f32 %v1004
        %vm1072 = vweird.f32 %v1065
        %vm1073 = vmor %vm1071, %vm1072
        %v1074 = vsel %vm1073, %v1065, %v1070
        %v1075 = vrsqrt.pop %v1005
        %v1076 = vmul.f32 %v1075, %v1005
        %v1077 = vmul.f32 %v1076, %v1075
        %v1078 = vmul.f32 0.5, %v1077
        %v1079 = vsub.f32 1.5, %v1078
        %v1080 = vmul.f32 %v1075, %v1079
        %vm1081 = vweird.f32 %v1005
        %vm1082 = vweird.f32 %v1075
        %vm1083 = vmor %vm1081, %vm1082
        %v1084 = vsel %vm1083, %v1075, %v1080
        %v1085 = vrsqrt.pop %v1006
        %v1086 = vmul.f32 %v1085, %v1006
        %v1087 = vmul.f32 %v1086, %v1085
        %v1088 = vmul.f32 0.5, %v1087
        %v1089 = vsub.f32 1.5, %v1088
        %v1090 = vmul.f32 %v1085, %v1089
        %vm1091 = vweird.f32 %v1006
        %vm1092 = vweird.f32 %v1085
        %vm1093 = vmor %vm1091, %vm1092
        %v1094 = vsel %vm1093, %v1085, %v1090
        %v1095 = vrsqrt.pop %v1007
        %v1096 = vmul.f32 %v1095, %v1007
        %v1097 = vmul.f32 %v1096, %v1095
        %v1098 = vmul.f32 0.5, %v1097
        %v1099 = vsub.f32 1.5, %v1098
        %v1100 = vmul.f32 %v1095, %v1099
        %vm1101 = vweird.f32 %v1007
        %vm1102 = vweird.f32 %v1095
        %vm1103 = vmor %vm1101, %vm1102
        %v1104 = vsel %vm1103, %v1095, %v1100
        %v1105 = vrsqrt.pop %v1008
        %v1106 = vmul.f32 %v1105, %v1008
        %v1107 = vmul.f32 %v1106, %v1105
        %v1108 = vmul.f32 0.5, %v1107
        %v1109 = vsub.f32 1.5, %v1108
        %v1110 = vmul.f32 %v1105, %v1109
        %vm1111 = vweird.f32 %v1008
        %vm1112 = vweird.f32 %v1105
        %vm1113 = vmor %vm1111, %vm1112
        %v1114 = vsel %vm1113, %v1105, %v1110
        %v1115 = vrsqrt.pop %v1009
        %v1116 = vmul.f32 %v1115, %v1009
        %v1117 = vmul.f32 %v1116, %v1115
        %v1118 = vmul.f32 0.5, %v1117
        %v1119 = vsub.f32 1.5, %v1118
        %v1120 = vmul.f32 %v1115, %v1119
        %vm1121 = vweird.f32 %v1009
        %vm1122 = vweird.f32 %v1115
        %vm1123 = vmor %vm1121, %vm1122
        %v1124 = vsel %vm1123, %v1115, %v1120
        %v1125 = vrsqrt.pop %v1010
        %v1126 = vmul.f32 %v1125, %v1010
        %v1127 = vmul.f32 %v1126, %v1125
        %v1128 = vmul.f32 0.5, %v1127
        %v1129 = vsub.f32 1.5, %v1128
        %v1130 = vmul.f32 %v1125, %v1129
        %vm1131 = vweird.f32 %v1010
        %vm1132 = vweird.f32 %v1125
        %vm1133 = vmor %vm1131, %vm1132
        %v1134 = vsel %vm1133, %v1125, %v1130
        %v1135 = vrsqrt.pop %v1011
        %v1136 = vmul.f32 %v1135, %v1011
        %v1137 = vmul.f32 %v1136, %v1135
        %v1138 = vmul.f32 0.5, %v1137
        %v1139 = vsub.f32 1.5, %v1138
        %v1140 = vmul.f32 %v1135, %v1139
        %vm1141 = vweird.f32 %v1011
        %vm1142 = vweird.f32 %v1135
        %vm1143 = vmor %vm1141, %vm1142
        %v1144 = vsel %vm1143, %v1135, %v1140
        %v1145 = vrsqrt.pop %v1012
        %v1146 = vmul.f32 %v1145, %v1012
        %v1147 = vmul.f32 %v1146, %v1145
        %v1148 = vmul.f32 0.5, %v1147
        %v1149 = vsub.f32 1.5, %v1148
        %v1150 = vmul.f32 %v1145, %v1149
        %vm1151 = vweird.f32 %v1012
        %vm1152 = vweird.f32 %v1145
        %vm1153 = vmor %vm1151, %vm1152
        %v1154 = vsel %vm1153, %v1145, %v1150
        %v1155 = vrsqrt.pop %v1013
        %v1156 = vmul.f32 %v1155, %v1013
        %v1157 = vmul.f32 %v1156, %v1155
        %v1158 = vmul.f32 0.5, %v1157
        %v1159 = vsub.f32 1.5, %v1158
        %v1160 = vmul.f32 %v1155, %v1159
        %vm1161 = vweird.f32 %v1013
        %vm1162 = vweird.f32 %v1155
        %vm1163 = vmor %vm1161, %vm1162
        %v1164 = vsel %vm1163, %v1155, %v1160
        %v1165 = vrsqrt.pop %v1014
        %v1166 = vmul.f32 %v1165, %v1014
        %v1167 = vmul.f32 %v1166, %v1165
        %v1168 = vmul.f32 0.5, %v1167
        %v1169 = vsub.f32 1.5, %v1168
        %v1170 = vmul.f32 %v1165, %v1169
        %vm1171 = vweird.f32 %v1014
        %vm1172 = vweird.f32 %v1165
        %vm1173 = vmor %vm1171, %vm1172
        %v1174 = vsel %vm1173, %v1165, %v1170
        %v1175 = vmul.f32 %v967, %v1024
        %v1176 = vmul.f32 %v968, %v1024
        %v1177 = vmul.f32 %v969, %v1034
        %v1178 = vmul.f32 %v970, %v1034
        %v1179 = vmul.f32 %v971, %v1044
        %v1180 = vmul.f32 %v972, %v1044
        %v1181 = vmul.f32 %v973, %v1054
        %v1182 = vmul.f32 %v974, %v1054
        %v1183 = vmul.f32 %v975, %v1064
        %v1184 = vmul.f32 %v976, %v1064
        %v1185 = vmul.f32 %v977, %v1074
        %v1186 = vmul.f32 %v978, %v1074
        %v1187 = vmul.f32 %v979, %v1084
        %v1188 = vmul.f32 %v980, %v1084
        %v1189 = vmul.f32 %v981, %v1094
        %v1190 = vmul.f32 %v982, %v1094
        %v1191 = vmul.f32 %v983, %v1104
        %v1192 = vmul.f32 %v984, %v1104
        %v1193 = vmul.f32 %v985, %v1114
        %v1194 = vmul.f32 %v986, %v1114
        %v1195 = vmul.f32 %v987, %v1124
        %v1196 = vmul.f32 %v988, %v1124
        %v1197 = vmul.f32 %v989, %v1134
        %v1198 = vmul.f32 %v990, %v1134
        %v1199 = vmul.f32 %v991, %v1144
        %v1200 = vmul.f32 %v992, %v1144
        %v1201 = vmul.f32 %v993, %v1154
        %v1202 = vmul.f32 %v994, %v1154
        %v1203 = vmul.f32 %v995, %v1164
        %v1204 = vmul.f32 %v996, %v1164
        %v1205 = vmul.f32 %v997, %v1174
        %v1206 = vmul.f32 %v998, %v1174
        %s1207 = scalar_lea.vmem [#allocation8], 1
        %v1208 = vld [vmem:[%s1207] ss:$4 sm:$0x3]
        %v1210 = vperm.slane %v1208, 0
        %v1211 = vperm.slane %v1208, 1
        %v1214 = vmul.f32 %v1175, %v1210
        %v1215 = vmul.f32 %v1176, %v1211
        %v1216 = vmul.f32 %v1177, %v1210
        %v1217 = vmul.f32 %v1178, %v1211
        %v1218 = vmul.f32 %v1179, %v1210
        %v1219 = vmul.f32 %v1180, %v1211
        %v1220 = vmul.f32 %v1181, %v1210
        %v1221 = vmul.f32 %v1182, %v1211
        %v1222 = vmul.f32 %v1183, %v1210
        %v1223 = vmul.f32 %v1184, %v1211
        %v1224 = vmul.f32 %v1185, %v1210
        %v1225 = vmul.f32 %v1186, %v1211
        %v1226 = vmul.f32 %v1187, %v1210
        %v1227 = vmul.f32 %v1188, %v1211
        %v1228 = vmul.f32 %v1189, %v1210
        %v1229 = vmul.f32 %v1190, %v1211
        %v1230 = vmul.f32 %v1191, %v1210
        %v1231 = vmul.f32 %v1192, %v1211
        %v1232 = vmul.f32 %v1193, %v1210
        %v1233 = vmul.f32 %v1194, %v1211
        %v1234 = vmul.f32 %v1195, %v1210
        %v1235 = vmul.f32 %v1196, %v1211
        %v1236 = vmul.f32 %v1197, %v1210
        %v1237 = vmul.f32 %v1198, %v1211
        %v1238 = vmul.f32 %v1199, %v1210
        %v1239 = vmul.f32 %v1200, %v1211
        %v1240 = vmul.f32 %v1201, %v1210
        %v1241 = vmul.f32 %v1202, %v1211
        %v1242 = vmul.f32 %v1203, %v1210
        %v1243 = vmul.f32 %v1204, %v1211
        %v1244 = vmul.f32 %v1205, %v1210
        %v1245 = vmul.f32 %v1206, %v1211
        %s1246 = scalar_lea.vmem [#allocation8], 2
        %v1247 = vld [vmem:[%s1246] ss:$4 sm:$0x3]
        %v1249 = vperm.slane %v1247, 0
        %v1250 = vperm.slane %v1247, 1
        %v1253 = vadd.f32 %v1214, %v1249
        %v1254 = vadd.f32 %v1215, %v1250
        %v1255 = vadd.f32 %v1216, %v1249
        %v1256 = vadd.f32 %v1217, %v1250
        %v1257 = vadd.f32 %v1218, %v1249
        %v1258 = vadd.f32 %v1219, %v1250
        %v1259 = vadd.f32 %v1220, %v1249
        %v1260 = vadd.f32 %v1221, %v1250
        %v1261 = vadd.f32 %v1222, %v1249
        %v1262 = vadd.f32 %v1223, %v1250
        %v1263 = vadd.f32 %v1224, %v1249
        %v1264 = vadd.f32 %v1225, %v1250
        %v1265 = vadd.f32 %v1226, %v1249
        %v1266 = vadd.f32 %v1227, %v1250
        %v1267 = vadd.f32 %v1228, %v1249
        %v1268 = vadd.f32 %v1229, %v1250
        %v1269 = vadd.f32 %v1230, %v1249
        %v1270 = vadd.f32 %v1231, %v1250
        %v1271 = vadd.f32 %v1232, %v1249
        %v1272 = vadd.f32 %v1233, %v1250
        %v1273 = vadd.f32 %v1234, %v1249
        %v1274 = vadd.f32 %v1235, %v1250
        %v1275 = vadd.f32 %v1236, %v1249
        %v1276 = vadd.f32 %v1237, %v1250
        %v1277 = vadd.f32 %v1238, %v1249
        %v1278 = vadd.f32 %v1239, %v1250
        %v1279 = vadd.f32 %v1240, %v1249
        %v1280 = vadd.f32 %v1241, %v1250
        %v1281 = vadd.f32 %v1242, %v1249
        %v1282 = vadd.f32 %v1243, %v1250
        %v1283 = vadd.f32 %v1244, %v1249
        %v1284 = vadd.f32 %v1245, %v1250
        %v1285 = vmax.f32 %v1253, 0.0
        %v1286 = vmax.f32 %v1254, 0.0
        %v1287 = vmax.f32 %v1255, 0.0
        %v1288 = vmax.f32 %v1256, 0.0
        %v1289 = vmax.f32 %v1257, 0.0
        %v1290 = vmax.f32 %v1258, 0.0
        %v1291 = vmax.f32 %v1259, 0.0
        %v1292 = vmax.f32 %v1260, 0.0
        %v1293 = vmax.f32 %v1261, 0.0
        %v1294 = vmax.f32 %v1262, 0.0
        %v1295 = vmax.f32 %v1263, 0.0
        %v1296 = vmax.f32 %v1264, 0.0
        %v1297 = vmax.f32 %v1265, 0.0
        %v1298 = vmax.f32 %v1266, 0.0
        %v1299 = vmax.f32 %v1267, 0.0
        %v1300 = vmax.f32 %v1268, 0.0
        %v1301 = vmax.f32 %v1269, 0.0
        %v1302 = vmax.f32 %v1270, 0.0
        %v1303 = vmax.f32 %v1271, 0.0
        %v1304 = vmax.f32 %v1272, 0.0
        %v1305 = vmax.f32 %v1273, 0.0
        %v1306 = vmax.f32 %v1274, 0.0
        %v1307 = vmax.f32 %v1275, 0.0
        %v1308 = vmax.f32 %v1276, 0.0
        %v1309 = vmax.f32 %v1277, 0.0
        %v1310 = vmax.f32 %v1278, 0.0
        %v1311 = vmax.f32 %v1279, 0.0
        %v1312 = vmax.f32 %v1280, 0.0
        %v1313 = vmax.f32 %v1281, 0.0
        %v1314 = vmax.f32 %v1282, 0.0
        %v1315 = vmax.f32 %v1283, 0.0
        %v1316 = vmax.f32 %v1284, 0.0
        %v1317 = vpack.c.bf16 %v1287, %v1285
        %v1318 = vpack.c.bf16 %v1288, %v1286
        %v1319 = vpack.c.bf16 %v1291, %v1289
        %v1320 = vpack.c.bf16 %v1292, %v1290
        %v1321 = vpack.c.bf16 %v1295, %v1293
        %v1322 = vpack.c.bf16 %v1296, %v1294
        %v1323 = vpack.c.bf16 %v1299, %v1297
        %v1324 = vpack.c.bf16 %v1300, %v1298
        %v1325 = vpack.c.bf16 %v1303, %v1301
        %v1326 = vpack.c.bf16 %v1304, %v1302
        %v1327 = vpack.c.bf16 %v1307, %v1305
        %v1328 = vpack.c.bf16 %v1308, %v1306
        %v1329 = vpack.c.bf16 %v1311, %v1309
        %v1330 = vpack.c.bf16 %v1312, %v1310
        %v1331 = vpack.c.bf16 %v1315, %v1313
        %v1332 = vpack.c.bf16 %v1316, %v1314
        %v1333 = vld [vmem:[#allocation7] sm:$0xf]
        %v1334 = vld [vmem:[#allocation7 + $0x4] sm:$0xf]
        %v1335 = vld [vmem:[#allocation7 + $0x8] sm:$0xf]
        %v1336 = vld [vmem:[#allocation7 + $0xc] sm:$0xf]
        %v1337 = vld [vmem:[#allocation7 + $0x10] sm:$0xf]
        %v1338 = vld [vmem:[#allocation7 + $0x14] sm:$0xf]
        %v1339 = vld [vmem:[#allocation7 + $0x18] sm:$0xf]
        %v1340 = vld [vmem:[#allocation7 + $0x1c] sm:$0xf]
        %v1341 = vld [vmem:[#allocation7 + $0x20] sm:$0xf]
        %v1342 = vld [vmem:[#allocation7 + $0x24] sm:$0xf]
        %v1343 = vld [vmem:[#allocation7 + $0x28] sm:$0xf]
        %v1344 = vld [vmem:[#allocation7 + $0x2c] sm:$0xf]
        %v1345 = vld [vmem:[#allocation7 + $0x30] sm:$0xf]
        %v1346 = vld [vmem:[#allocation7 + $0x34] sm:$0xf]
        %v1347 = vld [vmem:[#allocation7 + $0x38] sm:$0xf]
        %v1348 = vld [vmem:[#allocation7 + $0x3c] sm:$0xf]
        %v1349 = vld [vmem:[#allocation7 + $0x40] sm:$0xf]
        %v1350 = vld [vmem:[#allocation7 + $0x44] sm:$0xf]
        %v1351 = vld [vmem:[#allocation7 + $0x48] sm:$0xf]
        %v1352 = vld [vmem:[#allocation7 + $0x4c] sm:$0xf]
        %v1353 = vld [vmem:[#allocation7 + $0x50] sm:$0xf]
        %v1354 = vld [vmem:[#allocation7 + $0x54] sm:$0xf]
        %v1355 = vld [vmem:[#allocation7 + $0x58] sm:$0xf]
        %v1356 = vld [vmem:[#allocation7 + $0x5c] sm:$0xf]
        %v1357 = vld [vmem:[#allocation7 + $0x60] sm:$0xf]
        %v1358 = vld [vmem:[#allocation7 + $0x64] sm:$0xf]
        %v1359 = vld [vmem:[#allocation7 + $0x68] sm:$0xf]
        %v1360 = vld [vmem:[#allocation7 + $0x6c] sm:$0xf]
        %v1361 = vld [vmem:[#allocation7 + $0x70] sm:$0xf]
        %v1362 = vld [vmem:[#allocation7 + $0x74] sm:$0xf]
        %v1363 = vld [vmem:[#allocation7 + $0x78] sm:$0xf]
        %v1364 = vld [vmem:[#allocation7 + $0x7c] sm:$0xf]
        %v1365 = vld [vmem:[#allocation8 + $0x3] sm:$0x1]
        %v1366 = vperm.slane %v1365, 0
        %v1399 = vunpack.c.l.b16 %v1333
        %v1400 = vunpack.c.l.b16 %v1334
        %v1401 = vunpack.c.l.b16 %v1335
        %v1402 = vunpack.c.l.b16 %v1336
        %v1403 = vunpack.c.l.b16 %v1337
        %v1404 = vunpack.c.l.b16 %v1338
        %v1405 = vunpack.c.l.b16 %v1339
        %v1406 = vunpack.c.l.b16 %v1340
        %v1407 = vunpack.c.l.b16 %v1341
        %v1408 = vunpack.c.l.b16 %v1342
        %v1409 = vunpack.c.l.b16 %v1343
        %v1410 = vunpack.c.l.b16 %v1344
        %v1411 = vunpack.c.l.b16 %v1345
        %v1412 = vunpack.c.l.b16 %v1346
        %v1413 = vunpack.c.l.b16 %v1347
        %v1414 = vunpack.c.l.b16 %v1348
        %v1415 = vunpack.c.l.b16 %v1349
        %v1416 = vunpack.c.l.b16 %v1350
        %v1417 = vunpack.c.l.b16 %v1351
        %v1418 = vunpack.c.l.b16 %v1352
        %v1419 = vunpack.c.l.b16 %v1353
        %v1420 = vunpack.c.l.b16 %v1354
        %v1421 = vunpack.c.l.b16 %v1355
        %v1422 = vunpack.c.l.b16 %v1356
        %v1423 = vunpack.c.l.b16 %v1357
        %v1424 = vunpack.c.l.b16 %v1358
        %v1425 = vunpack.c.l.b16 %v1359
        %v1426 = vunpack.c.l.b16 %v1360
        %v1427 = vunpack.c.l.b16 %v1361
        %v1428 = vunpack.c.l.b16 %v1362
        %v1429 = vunpack.c.l.b16 %v1363
        %v1430 = vunpack.c.l.b16 %v1364
        %v1431 = vpack.c.b16 %v1400, %v1399
        %v1432 = vpack.c.b16 %v1402, %v1401
        %v1433 = vpack.c.b16 %v1404, %v1403
        %v1434 = vpack.c.b16 %v1406, %v1405
        %v1435 = vpack.c.b16 %v1408, %v1407
        %v1436 = vpack.c.b16 %v1410, %v1409
        %v1437 = vpack.c.b16 %v1412, %v1411
        %v1438 = vpack.c.b16 %v1414, %v1413
        %v1439 = vpack.c.b16 %v1416, %v1415
        %v1440 = vpack.c.b16 %v1418, %v1417
        %v1441 = vpack.c.b16 %v1420, %v1419
        %v1442 = vpack.c.b16 %v1422, %v1421
        %v1443 = vpack.c.b16 %v1424, %v1423
        %v1444 = vpack.c.b16 %v1426, %v1425
        %v1445 = vpack.c.b16 %v1428, %v1427
        %v1446 = vpack.c.b16 %v1430, %v1429
        %1463 = vmatpush.bf16.msra.mxu0 %v1438
        %1464 = vmatpush.bf16.msra.mxu0 %v1437
        %1465 = vmatpush.bf16.msra.mxu0 %v1436
        %1466 = vmatpush.bf16.msra.mxu0 %v1435
        %1467 = vmatpush.bf16.msra.mxu0 %v1434
        %1468 = vmatpush.bf16.msra.mxu0 %v1433
        %1469 = vmatpush.bf16.msra.mxu0 %v1432
        %1470 = vmatpush.bf16.msra.mxu0 %v1431
        %1471 = vmatmul.bf16.gmra.mxu0 %v1317
        %v1472 = vpop.f32.mrf.mxu0
        %v1473 = vadd.f32 %v1366, %v1472
        %v1474 = vpop.f32.mrf.mxu0
        %v1475 = vadd.f32 %v1366, %v1474
        %1476 = vmatmul.bf16.gmra.mxu0 %v1319
        %v1477 = vpop.f32.mrf.mxu0
        %v1478 = vadd.f32 %v1366, %v1477
        %v1479 = vpop.f32.mrf.mxu0
        %v1480 = vadd.f32 %v1366, %v1479
        %1481 = vmatmul.bf16.gmra.mxu0 %v1321
        %v1482 = vpop.f32.mrf.mxu0
        %v1483 = vadd.f32 %v1366, %v1482
        %v1484 = vpop.f32.mrf.mxu0
        %v1485 = vadd.f32 %v1366, %v1484
        %1486 = vmatmul.bf16.gmra.mxu0 %v1323
        %v1487 = vpop.f32.mrf.mxu0
        %v1488 = vadd.f32 %v1366, %v1487
        %v1489 = vpop.f32.mrf.mxu0
        %v1490 = vadd.f32 %v1366, %v1489
        %1491 = vmatmul.bf16.gmra.mxu0 %v1325
        %v1492 = vpop.f32.mrf.mxu0
        %v1493 = vadd.f32 %v1366, %v1492
        %v1494 = vpop.f32.mrf.mxu0
        %v1495 = vadd.f32 %v1366, %v1494
        %1496 = vmatmul.bf16.gmra.mxu0 %v1327
        %v1497 = vpop.f32.mrf.mxu0
        %v1498 = vadd.f32 %v1366, %v1497
        %v1499 = vpop.f32.mrf.mxu0
        %v1500 = vadd.f32 %v1366, %v1499
        %1501 = vmatmul.bf16.gmra.mxu0 %v1329
        %v1502 = vpop.f32.mrf.mxu0
        %v1503 = vadd.f32 %v1366, %v1502
        %v1504 = vpop.f32.mrf.mxu0
        %v1505 = vadd.f32 %v1366, %v1504
        %1506 = vmatmul.bf16.gmra.mxu0 %v1331
        %v1507 = vpop.f32.mrf.mxu0
        %v1508 = vadd.f32 %v1366, %v1507
        %v1509 = vpop.f32.mrf.mxu0
        %v1510 = vadd.f32 %v1366, %v1509
        %1511 = vdwg.mxu0
        %1512 = vmatpush.bf16.msra.mxu0 %v1446
        %1513 = vmatpush.bf16.msra.mxu0 %v1445
        %1514 = vmatpush.bf16.msra.mxu0 %v1444
        %1515 = vmatpush.bf16.msra.mxu0 %v1443
        %1516 = vmatpush.bf16.msra.mxu0 %v1442
        %1517 = vmatpush.bf16.msra.mxu0 %v1441
        %1518 = vmatpush.bf16.msra.mxu0 %v1440
        %1519 = vmatpush.bf16.msra.mxu0 %v1439
        %1520 = vmatmul.bf16.gmra.mxu0 %v1318
        %v1521 = vpop.f32.mrf.mxu0
        %v1522 = vadd.f32 %v1473, %v1521
        %v1523 = vpop.f32.mrf.mxu0
        %v1524 = vadd.f32 %v1475, %v1523
        %1525 = vmatmul.bf16.gmra.mxu0 %v1320
        %v1526 = vpop.f32.mrf.mxu0
        %v1527 = vadd.f32 %v1478, %v1526
        %v1528 = vpop.f32.mrf.mxu0
        %v1529 = vadd.f32 %v1480, %v1528
        %1530 = vmatmul.bf16.gmra.mxu0 %v1322
        %v1531 = vpop.f32.mrf.mxu0
        %v1532 = vadd.f32 %v1483, %v1531
        %v1533 = vpop.f32.mrf.mxu0
        %v1534 = vadd.f32 %v1485, %v1533
        %1535 = vmatmul.bf16.gmra.mxu0 %v1324
        %v1536 = vpop.f32.mrf.mxu0
        %v1537 = vadd.f32 %v1488, %v1536
        %v1538 = vpop.f32.mrf.mxu0
        %v1539 = vadd.f32 %v1490, %v1538
        %1540 = vmatmul.bf16.gmra.mxu0 %v1326
        %v1541 = vpop.f32.mrf.mxu0
        %v1542 = vadd.f32 %v1493, %v1541
        %v1543 = vpop.f32.mrf.mxu0
        %v1544 = vadd.f32 %v1495, %v1543
        %1545 = vmatmul.bf16.gmra.mxu0 %v1328
        %v1546 = vpop.f32.mrf.mxu0
        %v1547 = vadd.f32 %v1498, %v1546
        %v1548 = vpop.f32.mrf.mxu0
        %v1549 = vadd.f32 %v1500, %v1548
        %1550 = vmatmul.bf16.gmra.mxu0 %v1330
        %v1551 = vpop.f32.mrf.mxu0
        %v1552 = vadd.f32 %v1503, %v1551
        %v1553 = vpop.f32.mrf.mxu0
        %v1554 = vadd.f32 %v1505, %v1553
        %1555 = vmatmul.bf16.gmra.mxu0 %v1332
        %v1556 = vpop.f32.mrf.mxu0
        %v1557 = vadd.f32 %v1508, %v1556
        %v1558 = vpop.f32.mrf.mxu0
        %v1559 = vadd.f32 %v1510, %v1558
        %1560 = vdwg.mxu0
        %v1561 = vmul.f32 %v1522, %v1522
        %v1562 = vmul.f32 %v1524, %v1524
        %v1563 = vmul.f32 %v1527, %v1527
        %v1564 = vmul.f32 %v1529, %v1529
        %v1565 = vmul.f32 %v1532, %v1532
        %v1566 = vmul.f32 %v1534, %v1534
        %v1567 = vmul.f32 %v1537, %v1537
        %v1568 = vmul.f32 %v1539, %v1539
        %v1569 = vmul.f32 %v1542, %v1542
        %v1570 = vmul.f32 %v1544, %v1544
        %v1571 = vmul.f32 %v1547, %v1547
        %v1572 = vmul.f32 %v1549, %v1549
        %v1573 = vmul.f32 %v1552, %v1552
        %v1574 = vmul.f32 %v1554, %v1554
        %v1575 = vmul.f32 %v1557, %v1557
        %v1576 = vmul.f32 %v1559, %v1559
        %1577 = vadd.xlane.f32.xlu0 %v1561
        %v1578 = vpop.xlane.xlu0 %1577
        %1579 = vadd.xlane.f32.xlu0 %v1562
        %v1580 = vpop.xlane.xlu0 %1579
        %1581 = vadd.xlane.f32.xlu0 %v1563
        %v1582 = vpop.xlane.xlu0 %1581
        %1583 = vadd.xlane.f32.xlu0 %v1564
        %v1584 = vpop.xlane.xlu0 %1583
        %1585 = vadd.xlane.f32.xlu0 %v1565
        %v1586 = vpop.xlane.xlu0 %1585
        %1587 = vadd.xlane.f32.xlu0 %v1566
        %v1588 = vpop.xlane.xlu0 %1587
        %1589 = vadd.xlane.f32.xlu0 %v1567
        %v1590 = vpop.xlane.xlu0 %1589
        %1591 = vadd.xlane.f32.xlu0 %v1568
        %v1592 = vpop.xlane.xlu0 %1591
        %1593 = vadd.xlane.f32.xlu0 %v1569
        %v1594 = vpop.xlane.xlu0 %1593
        %1595 = vadd.xlane.f32.xlu0 %v1570
        %v1596 = vpop.xlane.xlu0 %1595
        %1597 = vadd.xlane.f32.xlu0 %v1571
        %v1598 = vpop.xlane.xlu0 %1597
        %1599 = vadd.xlane.f32.xlu0 %v1572
        %v1600 = vpop.xlane.xlu0 %1599
        %1601 = vadd.xlane.f32.xlu0 %v1573
        %v1602 = vpop.xlane.xlu0 %1601
        %1603 = vadd.xlane.f32.xlu0 %v1574
        %v1604 = vpop.xlane.xlu0 %1603
        %1605 = vadd.xlane.f32.xlu0 %v1575
        %v1606 = vpop.xlane.xlu0 %1605
        %1607 = vadd.xlane.f32.xlu0 %v1576
        %v1608 = vpop.xlane.xlu0 %1607
        %v1609 = vmax.f32 %v1578, 1e-24
        %v1610 = vmax.f32 %v1580, 1e-24
        %v1611 = vmax.f32 %v1582, 1e-24
        %v1612 = vmax.f32 %v1584, 1e-24
        %v1613 = vmax.f32 %v1586, 1e-24
        %v1614 = vmax.f32 %v1588, 1e-24
        %v1615 = vmax.f32 %v1590, 1e-24
        %v1616 = vmax.f32 %v1592, 1e-24
        %v1617 = vmax.f32 %v1594, 1e-24
        %v1618 = vmax.f32 %v1596, 1e-24
        %v1619 = vmax.f32 %v1598, 1e-24
        %v1620 = vmax.f32 %v1600, 1e-24
        %v1621 = vmax.f32 %v1602, 1e-24
        %v1622 = vmax.f32 %v1604, 1e-24
        %v1623 = vmax.f32 %v1606, 1e-24
        %v1624 = vmax.f32 %v1608, 1e-24
        %v1625 = vrsqrt.pop %v1609
        %v1626 = vmul.f32 %v1625, %v1609
        %v1627 = vmul.f32 %v1626, %v1625
        %v1628 = vmul.f32 0.5, %v1627
        %v1629 = vsub.f32 1.5, %v1628
        %v1630 = vmul.f32 %v1625, %v1629
        %vm1631 = vweird.f32 %v1609
        %vm1632 = vweird.f32 %v1625
        %vm1633 = vmor %vm1631, %vm1632
        %v1634 = vsel %vm1633, %v1625, %v1630
        %v1635 = vrsqrt.pop %v1610
        %v1636 = vmul.f32 %v1635, %v1610
        %v1637 = vmul.f32 %v1636, %v1635
        %v1638 = vmul.f32 0.5, %v1637
        %v1639 = vsub.f32 1.5, %v1638
        %v1640 = vmul.f32 %v1635, %v1639
        %vm1641 = vweird.f32 %v1610
        %vm1642 = vweird.f32 %v1635
        %vm1643 = vmor %vm1641, %vm1642
        %v1644 = vsel %vm1643, %v1635, %v1640
        %v1645 = vrsqrt.pop %v1611
        %v1646 = vmul.f32 %v1645, %v1611
        %v1647 = vmul.f32 %v1646, %v1645
        %v1648 = vmul.f32 0.5, %v1647
        %v1649 = vsub.f32 1.5, %v1648
        %v1650 = vmul.f32 %v1645, %v1649
        %vm1651 = vweird.f32 %v1611
        %vm1652 = vweird.f32 %v1645
        %vm1653 = vmor %vm1651, %vm1652
        %v1654 = vsel %vm1653, %v1645, %v1650
        %v1655 = vrsqrt.pop %v1612
        %v1656 = vmul.f32 %v1655, %v1612
        %v1657 = vmul.f32 %v1656, %v1655
        %v1658 = vmul.f32 0.5, %v1657
        %v1659 = vsub.f32 1.5, %v1658
        %v1660 = vmul.f32 %v1655, %v1659
        %vm1661 = vweird.f32 %v1612
        %vm1662 = vweird.f32 %v1655
        %vm1663 = vmor %vm1661, %vm1662
        %v1664 = vsel %vm1663, %v1655, %v1660
        %v1665 = vrsqrt.pop %v1613
        %v1666 = vmul.f32 %v1665, %v1613
        %v1667 = vmul.f32 %v1666, %v1665
        %v1668 = vmul.f32 0.5, %v1667
        %v1669 = vsub.f32 1.5, %v1668
        %v1670 = vmul.f32 %v1665, %v1669
        %vm1671 = vweird.f32 %v1613
        %vm1672 = vweird.f32 %v1665
        %vm1673 = vmor %vm1671, %vm1672
        %v1674 = vsel %vm1673, %v1665, %v1670
        %v1675 = vrsqrt.pop %v1614
        %v1676 = vmul.f32 %v1675, %v1614
        %v1677 = vmul.f32 %v1676, %v1675
        %v1678 = vmul.f32 0.5, %v1677
        %v1679 = vsub.f32 1.5, %v1678
        %v1680 = vmul.f32 %v1675, %v1679
        %vm1681 = vweird.f32 %v1614
        %vm1682 = vweird.f32 %v1675
        %vm1683 = vmor %vm1681, %vm1682
        %v1684 = vsel %vm1683, %v1675, %v1680
        %v1685 = vrsqrt.pop %v1615
        %v1686 = vmul.f32 %v1685, %v1615
        %v1687 = vmul.f32 %v1686, %v1685
        %v1688 = vmul.f32 0.5, %v1687
        %v1689 = vsub.f32 1.5, %v1688
        %v1690 = vmul.f32 %v1685, %v1689
        %vm1691 = vweird.f32 %v1615
        %vm1692 = vweird.f32 %v1685
        %vm1693 = vmor %vm1691, %vm1692
        %v1694 = vsel %vm1693, %v1685, %v1690
        %v1695 = vrsqrt.pop %v1616
        %v1696 = vmul.f32 %v1695, %v1616
        %v1697 = vmul.f32 %v1696, %v1695
        %v1698 = vmul.f32 0.5, %v1697
        %v1699 = vsub.f32 1.5, %v1698
        %v1700 = vmul.f32 %v1695, %v1699
        %vm1701 = vweird.f32 %v1616
        %vm1702 = vweird.f32 %v1695
        %vm1703 = vmor %vm1701, %vm1702
        %v1704 = vsel %vm1703, %v1695, %v1700
        %v1705 = vrsqrt.pop %v1617
        %v1706 = vmul.f32 %v1705, %v1617
        %v1707 = vmul.f32 %v1706, %v1705
        %v1708 = vmul.f32 0.5, %v1707
        %v1709 = vsub.f32 1.5, %v1708
        %v1710 = vmul.f32 %v1705, %v1709
        %vm1711 = vweird.f32 %v1617
        %vm1712 = vweird.f32 %v1705
        %vm1713 = vmor %vm1711, %vm1712
        %v1714 = vsel %vm1713, %v1705, %v1710
        %v1715 = vrsqrt.pop %v1618
        %v1716 = vmul.f32 %v1715, %v1618
        %v1717 = vmul.f32 %v1716, %v1715
        %v1718 = vmul.f32 0.5, %v1717
        %v1719 = vsub.f32 1.5, %v1718
        %v1720 = vmul.f32 %v1715, %v1719
        %vm1721 = vweird.f32 %v1618
        %vm1722 = vweird.f32 %v1715
        %vm1723 = vmor %vm1721, %vm1722
        %v1724 = vsel %vm1723, %v1715, %v1720
        %v1725 = vrsqrt.pop %v1619
        %v1726 = vmul.f32 %v1725, %v1619
        %v1727 = vmul.f32 %v1726, %v1725
        %v1728 = vmul.f32 0.5, %v1727
        %v1729 = vsub.f32 1.5, %v1728
        %v1730 = vmul.f32 %v1725, %v1729
        %vm1731 = vweird.f32 %v1619
        %vm1732 = vweird.f32 %v1725
        %vm1733 = vmor %vm1731, %vm1732
        %v1734 = vsel %vm1733, %v1725, %v1730
        %v1735 = vrsqrt.pop %v1620
        %v1736 = vmul.f32 %v1735, %v1620
        %v1737 = vmul.f32 %v1736, %v1735
        %v1738 = vmul.f32 0.5, %v1737
        %v1739 = vsub.f32 1.5, %v1738
        %v1740 = vmul.f32 %v1735, %v1739
        %vm1741 = vweird.f32 %v1620
        %vm1742 = vweird.f32 %v1735
        %vm1743 = vmor %vm1741, %vm1742
        %v1744 = vsel %vm1743, %v1735, %v1740
        %v1745 = vrsqrt.pop %v1621
        %v1746 = vmul.f32 %v1745, %v1621
        %v1747 = vmul.f32 %v1746, %v1745
        %v1748 = vmul.f32 0.5, %v1747
        %v1749 = vsub.f32 1.5, %v1748
        %v1750 = vmul.f32 %v1745, %v1749
        %vm1751 = vweird.f32 %v1621
        %vm1752 = vweird.f32 %v1745
        %vm1753 = vmor %vm1751, %vm1752
        %v1754 = vsel %vm1753, %v1745, %v1750
        %v1755 = vrsqrt.pop %v1622
        %v1756 = vmul.f32 %v1755, %v1622
        %v1757 = vmul.f32 %v1756, %v1755
        %v1758 = vmul.f32 0.5, %v1757
        %v1759 = vsub.f32 1.5, %v1758
        %v1760 = vmul.f32 %v1755, %v1759
        %vm1761 = vweird.f32 %v1622
        %vm1762 = vweird.f32 %v1755
        %vm1763 = vmor %vm1761, %vm1762
        %v1764 = vsel %vm1763, %v1755, %v1760
        %v1765 = vrsqrt.pop %v1623
        %v1766 = vmul.f32 %v1765, %v1623
        %v1767 = vmul.f32 %v1766, %v1765
        %v1768 = vmul.f32 0.5, %v1767
        %v1769 = vsub.f32 1.5, %v1768
        %v1770 = vmul.f32 %v1765, %v1769
        %vm1771 = vweird.f32 %v1623
        %vm1772 = vweird.f32 %v1765
        %vm1773 = vmor %vm1771, %vm1772
        %v1774 = vsel %vm1773, %v1765, %v1770
        %v1775 = vrsqrt.pop %v1624
        %v1776 = vmul.f32 %v1775, %v1624
        %v1777 = vmul.f32 %v1776, %v1775
        %v1778 = vmul.f32 0.5, %v1777
        %v1779 = vsub.f32 1.5, %v1778
        %v1780 = vmul.f32 %v1775, %v1779
        %vm1781 = vweird.f32 %v1624
        %vm1782 = vweird.f32 %v1775
        %vm1783 = vmor %vm1781, %vm1782
        %v1784 = vsel %vm1783, %v1775, %v1780
        %v1785 = vmul.f32 %v1522, %v1634
        %v1786 = vmul.f32 %v1524, %v1644
        %v1787 = vmul.f32 %v1527, %v1654
        %v1788 = vmul.f32 %v1529, %v1664
        %v1789 = vmul.f32 %v1532, %v1674
        %v1790 = vmul.f32 %v1534, %v1684
        %v1791 = vmul.f32 %v1537, %v1694
        %v1792 = vmul.f32 %v1539, %v1704
        %v1793 = vmul.f32 %v1542, %v1714
        %v1794 = vmul.f32 %v1544, %v1724
        %v1795 = vmul.f32 %v1547, %v1734
        %v1796 = vmul.f32 %v1549, %v1744
        %v1797 = vmul.f32 %v1552, %v1754
        %v1798 = vmul.f32 %v1554, %v1764
        %v1799 = vmul.f32 %v1557, %v1774
        %v1800 = vmul.f32 %v1559, %v1784
        %1801 = vst [vmem:[%s266] sm:$0xff] %v1785
        %1802 = vst [vmem:[%s266 + $0x8] sm:$0xff] %v1786
        %1803 = vst [vmem:[%s266 + $0x10] sm:$0xff] %v1787
        %1804 = vst [vmem:[%s266 + $0x18] sm:$0xff] %v1788
        %1805 = vst [vmem:[%s266 + $0x20] sm:$0xff] %v1789
        %1806 = vst [vmem:[%s266 + $0x28] sm:$0xff] %v1790
        %1807 = vst [vmem:[%s266 + $0x30] sm:$0xff] %v1791
        %1808 = vst [vmem:[%s266 + $0x38] sm:$0xff] %v1792
        %1809 = vst [vmem:[%s266 + $0x40] sm:$0xff] %v1793
        %1810 = vst [vmem:[%s266 + $0x48] sm:$0xff] %v1794
        %1811 = vst [vmem:[%s266 + $0x50] sm:$0xff] %v1795
        %1812 = vst [vmem:[%s266 + $0x58] sm:$0xff] %v1796
        %1813 = vst [vmem:[%s266 + $0x60] sm:$0xff] %v1797
        %1814 = vst [vmem:[%s266 + $0x68] sm:$0xff] %v1798
        %1815 = vst [vmem:[%s266 + $0x70] sm:$0xff] %v1799
        %1816 = vst [vmem:[%s266 + $0x78] sm:$0xff] %v1800
        %s1817 = sand.u32 %s120, 1
        %s1818 = scalar_lea.sflag [#allocation4], %s1817
        %s1819 = sand.u32 %s120, 1
        %s1820 = smul.addr %s1819, 128
        %s1821 = scalar_lea.vmem [#allocation10], %s1820
        // Predicated region
        $region53: #{tpu_custom_call.1} parent=35 // pred_check
          %p1822 = pneg %p130
        $region54: #{tpu_custom_call.1} parent=35 // pred_check_branch
          %1824 = sbr.rel (%p1822) target = $region56
        $region55: #{tpu_custom_call.1} parent=35 // pred_region
          %s1825 = smul.u32 16, %s23
          %1827 = vsyncadd %s1818, 0
          %s1828 = smul.addr %s1825, 8
          %s1829 = scalar_lea.hbm %s4, %s1828
          %s1830 = sshll.u32 %s1821, 4
          %s1831 = int_to_ptr.vmem [resolvable:$true] %s1830
          %s1832 = sshll.u32 %s1829, 4
          %s1833 = int_to_ptr.hbm [resolvable:$true] %s1832
          %1838 = dma.vmem_to_hbm [thread:$0]  %s1831, 2048, %s1833, %s1818, 128, 128, 8
        $region56: #{tpu_custom_call.1} parent=35 // pred_fallthru
          _
      $region36: #{tpu_custom_call.1} parent=5 // pred_fallthru
        _
      %p1839 = scmp.le.s32.totalorder 2, %s18
      // Predicated region
      $region57: #{tpu_custom_call.1} parent=5 // pred_check
        %p1840 = pneg %p1839
      $region58: #{tpu_custom_call.1} parent=5 // pred_check_branch
        %1842 = sbr.rel (%p1840) target = $region60
      $region59: #{tpu_custom_call.1} parent=5 // pred_region
        %s1843 = ssub.s32 %s18, 2
        // Predicated region
        $region61: #{tpu_custom_call.1} parent=59 // pred_check
          %p1844 = pneg %p136
        $region62: #{tpu_custom_call.1} parent=59 // pred_check_branch
          %1846 = sbr.rel (%p1844) target = $region64
        $region63: #{tpu_custom_call.1} parent=59 // pred_region
          %s1847 = sand.u32 %s121, 1
          %s1848 = scalar_lea.sflag [#allocation4], %s1847
          %s1849 = sand.u32 %s121, 1
          %s1850 = smul.addr %s1849, 128
          %s1851 = scalar_lea.vmem [#allocation10], %s1850
          %1853 = dma.done %s1848, 2048
        $region64: #{tpu_custom_call.1} parent=59 // pred_fallthru
          _
      $region60: #{tpu_custom_call.1} parent=5 // pred_fallthru
        _
    $region6: #{tpu_custom_call.1} parent=1 // loop_footer
      %s22 = sadd.s32 1, %s18
    $region7: #{tpu_custom_call.1} parent=1 // loop_footer_branch
      %17 = sbr.rel target = $region3
    $region8: #{tpu_custom_call.1} parent=1 // loop_exit
      _
    %1854 = vsyncpa [#allocation3], 1
    %s1855 = scalar_lea.sflag [#allocation3], 1
    %1856 = vsyncpa %s1855, 1
    %1857 = vsyncpa [#allocation6], 1
    %1858 = vsyncpa [#allocation9], 1
    %1859 = vsyncpa [#allocation4], 1
    %s1860 = scalar_lea.sflag [#allocation4], 1
    %1861 = vsyncpa %s1860, 1

</llo_original>
